<compile_context>
chip_gen: v6e
topology: v6e:2x2x1
jax: 0.10.0
libtpu: 0.0.40
codegen_flags: <defaults>
</compile_context>

<pallas_src>
import jax
import jax.numpy as jnp
from jax import lax
from jax.experimental import pallas as pl
from jax.experimental.pallas import tpu as pltpu

_VMEM_LIMIT = 48 * 1024 * 1024   # scoped-VMEM cap (safe on v7x's 64 MiB VMEM)
_SMALL_M = 256                   # tiny layers: skip Pallas, use jnp.dot


# ---------------------------------------------------------------------------
# Pallas fused tap matmul:  (M, Cin)bf16 @ (Cin, kH*kW*Cout)bf16 -> bf16 taps
# ---------------------------------------------------------------------------
def _matmul_kernel(x_ref, w_ref, o_ref):
    # bf16 x bf16 on the MXU with f32 accumulation; taps stored as bf16.
    o_ref[...] = jnp.dot(x_ref[...], w_ref[...],
                         preferred_element_type=jnp.float32).astype(o_ref.dtype)


def _choose_tm(M, Cin, Kc):
    # ~4 MiB of bf16 per (x-block + out-block); Pallas double-buffers these,
    # so peak VMEM stays well under the scoped limit on every generation.
    tm = (4 * 1024 * 1024) // (2 * (Cin + Kc))
    tm = max(256, min(8192, (tm // 256) * 256))
    # Keep >= 4 grid steps on the big layers so v7x's 2 TensorCores balance
    # and the exposed prologue/epilogue DMA stays small.
    while tm > 512 and pl.cdiv(M, tm) < 4:
        tm //= 2
    return tm


def pallas_matmul(x, w):
    """x: (M, Cin) bf16, w: (Cin, Kc) bf16 -> (M, Kc) bf16 (f32 MXU accum)."""
    M, Cin = x.shape
    Kc = w.shape[1]
    if M <= _SMALL_M:   # tiny layer: a Pallas launch is pure overhead
        return jnp.dot(x, w, preferred_element_type=jnp.float32).astype(jnp.bfloat16)
    tm = _choose_tm(M, Cin, Kc)
    return pl.pallas_call(
        _matmul_kernel,
        out_shape=jax.ShapeDtypeStruct((M, Kc), jnp.bfloat16),
        grid_spec=pltpu.PrefetchScalarGridSpec(
            num_scalar_prefetch=0,
            grid=(pl.cdiv(M, tm),),                # partial last block is masked
            in_specs=[
                pl.BlockSpec((tm, Cin), lambda m: (m, 0)),
                pl.BlockSpec((Cin, Kc), lambda m: (0, 0)),   # weight stays resident
            ],
            out_specs=pl.BlockSpec((tm, Kc), lambda m: (m, 0)),
        ),
        compiler_params=pltpu.CompilerParams(
            dimension_semantics=("parallel",),
            vmem_limit_bytes=_VMEM_LIMIT,
        ),
    )(x, w)


# ---------------------------------------------------------------------------
# ConvTranspose2d (stride 2, no padding) built on the Pallas tap matmul
# ---------------------------------------------------------------------------
def pack_weight(w):
    """PyTorch ConvTranspose2d weight (Cin, Cout, kH, kW) -> (Cin, kH*kW*Cout) bf16."""
    cin, cout, kh, kw = w.shape
    return jnp.transpose(w, (0, 2, 3, 1)).reshape(cin, kh * kw * cout).astype(jnp.bfloat16)


def _interleave(a, b, axis, total):
    """Interleave a (even positions) and b (odd positions) along `axis`."""
    na, nb = a.shape[axis], b.shape[axis]
    if nb < na:
        pad = [(0, 0)] * a.ndim
        pad[axis] = (0, na - nb)
        b = jnp.pad(b, pad)
    s = jnp.stack([a, b], axis=axis + 1)
    shape = list(a.shape)
    shape[axis] = 2 * na
    s = s.reshape(shape)
    return lax.slice_in_dim(s, 0, total, axis=axis)


def conv_transpose2d(x, w2, b, k, cout, act, out_dtype=jnp.bfloat16):
    """PyTorch ConvTranspose2d(stride=2, padding=0, output_padding=0).

    x:  (N, H, W, Cin) bf16 NHWC
    w2: (Cin, k*k*cout) bf16 packed with pack_weight()
    b:  (cout,) f32, or None -> raw (un-biased / un-activated) output.
    """
    N, H, W, Cin = x.shape
    OH = (H - 1) * 2 + k
    OW = (W - 1) * 2 + k

    # All k*k taps in one fused MXU matmul (the only heavy compute).
    y = pallas_matmul(x.reshape(N * H * W, Cin), w2)
    y = y.reshape(N, H, W, k, k, cout)

    # Stride-2 parity combine: out[2*ih+kh, 2*iw+kw] += y[ih, iw, kh, kw].
    # Each parity plane is a sum of zero-padded tap slices (pads + adds only),
    # which XLA fuses with the interleave / bias / activation epilogue below,
    # so each tap element is read exactly once and each output written once.
    rows = []
    for p in (0, 1):
        nrp = (OH - p + 1) // 2
        cols = []
        for q in (0, 1):
            ncq = (OW - q + 1) // 2
            plane = None
            for kh in range(p, k, 2):
                dh = (kh - p) // 2
                for kw in range(q, k, 2):
                    dw = (kw - q) // 2
                    t = y[:, :, :, kh, kw, :].astype(jnp.float32)
                    t = jnp.pad(t, ((0, 0), (dh, nrp - H - dh),
                                    (dw, ncq - W - dw), (0, 0)))
                    plane = t if plane is None else plane + t
            cols.append(plane)
        rows.append(_interleave(cols[0], cols[1], axis=2, total=OW))
    out = _interleave(rows[0], rows[1], axis=1, total=OH)

    if b is not None:
        out = out + b.astype(jnp.float32)
        if act == "relu":
            out = jnp.maximum(out, 0.0)
        elif act == "sigmoid":
            out = jax.nn.sigmoid(out)
    return out.astype(out_dtype)


# ---------------------------------------------------------------------------
# Decoder
# ---------------------------------------------------------------------------
_LAYER_CFG = [
    (128, 512, 3),  # conv2
    (512, 512, 3),  # convt1
    (512, 256, 3),  # convt2
    (256, 256, 3),  # convt3
    (256, 128, 3),  # convt4
    (128, 128, 3),  # convt5
    (128, 64, 3),   # convt6
    (64, 64, 3),    # convt7
    (64, 3, 7),     # convt8
]
# conv2 -> none, convt1..convt7 -> ReLU, convt8 -> none (sigmoid after interpolate).
_LAYER_ACT = ["none"] + ["relu"] * 7 + ["none"]


def init_decoder_params(key):
    params = []
    for cin, cout, k in _LAYER_CFG:
        key, kw_key, kb_key = jax.random.split(key, 3)
        bound = 1.0 / float(cin * k * k) ** 0.5
        w = jax.random.uniform(kw_key, (cin, cout, k, k), jnp.float32, -bound, bound)
        b = jax.random.uniform(kb_key, (cout,), jnp.float32, -bound, bound)
        params.append((w, b))
    return params


def pack_params(params):
    """Pre-pack weights once, outside jit: (Cin, k*k*Cout) bf16 + f32 bias."""
    return [(pack_weight(w), b.astype(jnp.float32)) for (w, b) in params]


def decoder_forward(x_nchw, packed_params):
    x = jnp.transpose(x_nchw, (0, 2, 3, 1)).astype(jnp.bfloat16)   # NCHW -> NHWC bf16

    n_layers = len(packed_params)
    for i, ((w2, b), (_cin, cout, k), act) in enumerate(
            zip(packed_params, _LAYER_CFG, _LAYER_ACT)):
        is_last = i == n_layers - 1
        # Last layer: bias commutes with the nearest-neighbour gather, so it is
        # fused with the final sigmoid after the (256, 306) gather below.
        x = conv_transpose2d(x, w2, None if is_last else b, k, cout, act,
                             out_dtype=jnp.float32 if is_last else jnp.bfloat16)

    # F.interpolate(size=(256, 306)), mode='nearest': src = floor(dst * in / out).
    N, H, W, C = x.shape
    idx_h = (jnp.arange(256) * H) // 256
    idx_w = (jnp.arange(306) * W) // 306
    x = x[:, idx_h][:, :, idx_w]                                   # (N, 256, 306, C)

    # convt8 bias + sigmoid on the small gathered tensor (XLA-fused).
    x = jax.nn.sigmoid(x + packed_params[-1][1])

    return jnp.transpose(x, (0, 3, 1, 2))                          # NHWC -> NCHW, f32


# ---------------------------------------------------------------------------
# Self-test of the transposed-conv decomposition against lax.conv
# ---------------------------------------------------------------------------
def _reference_conv_transpose(x, w, b, act):
    k_h, k_w = w.shape[2], w.shape[3]
    rhs = jnp.transpose(jnp.flip(w, axis=(2, 3)), (2, 3, 0, 1))    # HWIO
    out = lax.conv_general_dilated(
        x, rhs, window_strides=(1, 1),
        padding=[(k_h - 1, k_h - 1), (k_w - 1, k_w - 1)],
        lhs_dilation=(2, 2),
        dimension_numbers=("NHWC", "HWIO", "NHWC"))
    out = out + b
    if act == "relu":
        out = jnp.maximum(out, 0.0)
    return out


def _self_test():
    key = jax.random.PRNGKey(42)
    # Shapes large enough (M > _SMALL_M) to exercise the Pallas path, including
    # masked partial last blocks, for both k=3 and k=7.
    for cin, cout, k, n, h, w_sp in [(16, 8, 3, 2, 20, 24), (8, 16, 7, 2, 17, 19)]:
        key, k1, k2, k3 = jax.random.split(key, 4)
        # bf16-representable values so the bf16 MXU path and the f32 reference
        # differ only by bf16 rounding of the tap tensor.
        x = jax.random.normal(k1, (n, h, w_sp, cin), jnp.float32)
        x = x.astype(jnp.bfloat16).astype(jnp.float32)
        w = jax.random.normal(k2, (cin, cout, k, k), jnp.float32) * 0.25
        w = w.astype(jnp.bfloat16).astype(jnp.float32)
        b = jax.random.normal(k3, (cout,), jnp.float32)
        b = b.astype(jnp.bfloat16).astype(jnp.float32)
        got = conv_transpose2d(x.astype(jnp.bfloat16), pack_weight(w), b, k, cout,
                               act="relu", out_dtype=jnp.float32)
        want = _reference_conv_transpose(x, w, b, "relu")
        err = float(jnp.max(jnp.abs(got - want)))
        scale = float(jnp.max(jnp.abs(want))) + 1e-6
        assert err <= 0.03 * scale + 1e-2, (
            f"conv_transpose2d mismatch (k={k}): err={err}, scale={scale}")


if __name__ == "__main__":
    _self_test()

    key = jax.random.PRNGKey(0)
    kx, kp = jax.random.split(key)

    # Smallest input consistent with the module: (N, 128, 1, 1) -> (N, 3, 256, 306).
    x = jax.random.normal(kx, (1, 128, 1, 1), jnp.float32)
    params = init_decoder_params(kp)
    packed = pack_params(params)            # weight packing happens outside jit

    out = jax.block_until_ready(jax.jit(decoder_forward)(x, packed))

    assert out.shape == (1, 3, 256, 306), out.shape
    assert out.dtype == jnp.float32
    assert bool(jnp.all(jnp.isfinite(out)))
    assert bool(jnp.all((out >= 0.0) & (out <= 1.0)))   # sigmoid range sanity check
    print("KERNEL_OK")
</pallas_src>

<mosaic_0001>
module attributes {stable_mosaic.version = 11 : i64} {
  func.func @_matmul_kernel(%arg0: i32, %arg1: memref<512x16xbf16, #tpu.memory_space<vmem>>, %arg2: memref<16x72xbf16, #tpu.memory_space<vmem>>, %arg3: memref<512x72xbf16, #tpu.memory_space<vmem>>) attributes {dimension_semantics = [#tpu.dimension_semantics<parallel>], iteration_bounds = array<i64: 2>, scalar_prefetch = 0 : i64, scratch_operands = 0 : i64, tpu.core_type = #tpu.core_type<tc>, window_params = [{transform_indices = @transform_0, window_bounds = array<i64: 512, 16>}, {pipeline_mode = #tpu.pipeline_mode<synchronous>, transform_indices = @transform_1, window_bounds = array<i64: 16, 72>}, {transform_indices = @transform_2, window_bounds = array<i64: 512, 72>}]} {
    %c0 = arith.constant 0 : index
    %c0_0 = arith.constant 0 : index
    %0 = vector.load %arg1[%c0, %c0_0] : memref<512x16xbf16, #tpu.memory_space<vmem>>, vector<512x16xbf16>
    %c0_1 = arith.constant 0 : index
    %c0_2 = arith.constant 0 : index
    %1 = vector.load %arg2[%c0_1, %c0_2] : memref<16x72xbf16, #tpu.memory_space<vmem>>, vector<16x72xbf16>
    %cst = arith.constant dense<0.000000e+00> : vector<512x72xf32>
    %2 = tpu.matmul %0, %1, %cst {dimension_numbers = #tpu.dot_dimension_numbers<[1], [0], [0], [1], [0, 0, 1, 1], [], []>} : vector<512x16xbf16>, vector<16x72xbf16>, vector<512x72xf32> -> vector<512x72xf32>
    %3 = arith.truncf %2 : vector<512x72xf32> to vector<512x72xbf16>
    %c0_3 = arith.constant 0 : index
    %c0_4 = arith.constant 0 : index
    %4 = vector.load %arg3[%c0_3, %c0_4] : memref<512x72xbf16, #tpu.memory_space<vmem>>, vector<512x72xbf16>
    tpu.vector_store %arg3[%c0_3, %c0_4], %3 {strides = array<i32>} : memref<512x72xbf16, #tpu.memory_space<vmem>>, vector<512x72xbf16>,
    return
  }
  func.func @transform_0(%arg0: i32) -> (i32, i32) {
    %c0_i32 = arith.constant 0 : i32
    %c0_i32_0 = arith.constant 0 : i32
    return %arg0, %c0_i32 : i32, i32
  }
  func.func @transform_1(%arg0: i32) -> (i32, i32) {
    %c0_i32 = arith.constant 0 : i32
    %c0_i32_0 = arith.constant 0 : i32
    %c0_i32_1 = arith.constant 0 : i32
    return %c0_i32, %c0_i32_0 : i32, i32
  }
  func.func @transform_2(%arg0: i32) -> (i32, i32) {
    %c0_i32 = arith.constant 0 : i32
    %c0_i32_0 = arith.constant 0 : i32
    return %arg0, %c0_i32 : i32, i32
  }
}

</mosaic_0001>

<llo_original>
// kernel: tpu_custom_call.1
$region0: #{tpu_custom_call.1}
  #allocation0 [shape = 'u32[]', space=smem, size = 0x4, offset = 0x4, fixed_abs, tag = 'smem constant byte address 0x4 - core index']
  #allocation1 [shape = 'u32[144,128]{1,0:T(1,128)}', space=vmem, size = 0x12000, scoped, tag = 'internal scratch']
  %s0 = inlined_call_operand.vmem [shape: bf16[960,16], index: 0, kind: input, shape index: {}]
  %s1 = inlined_call_operand.vmem [shape: bf16[16,72], index: 1, kind: input, shape index: {}]
  %s2 = inlined_call_operand.vmem [shape: bf16[960,72], index: 2, kind: output, shape index: {}]
  %s3 = sld [smem:[#allocation0]]
  $region85: #{tpu_custom_call.1} parent=0
    _
  %s5 = ssub.s32 1, %s3
  %s6 = scalar_select 0, %s5, %s3
  $region1: #{tpu_custom_call.1} parent=0
    #allocation2 [shape = 'u8[262144]{0}', space=vmem, size = 0x40000, scoped, tag = 'output window, operand 0']
    loop: start=0, step=1, limit=4
    $region2: #{tpu_custom_call.1} parent=1 // loop_pre_header
      _
    $region3: #{tpu_custom_call.1} parent=1 // loop_header
      %s8 = sphi 0, %s12
      %p9 = scmp.ge.s32.totalorder %s8, 4
      %s18 = sphi 0, %s20
      %s21 = sphi 0, %s18
      %s22 = sphi 0, %s21
      %s38 = sphi 0, %s22
      %s42 = sphi 0, %s42
      %s44 = sphi 0, %s42
      %s45 = sphi 0, %s44
      %s59 = sphi 0, %s45
      %s65 = sphi 0, %s67
      %s68 = sphi 0, %s65
      %s69 = sphi 0, %s68
      %s85 = sphi 0, %s69
    $region4: #{tpu_custom_call.1} parent=1 // loop_header_branch
      %11 = sbr.rel (%p9) target = $region8
    $region5: #{tpu_custom_call.1} parent=1 // loop_body
      %s13 = ssub.s32 %s8, 1
      %s14 = ssub.s32 %s8, 2
      %s15 = sadd.s32 %s8, 1
      %s16 = ssub.s32 %s8, %s15
      %p17 = scmp.eq.s32.totalorder %s16, 0
      %s19 = sadd.s32 %s18, 1
      %s20 = scalar_select %p17, %s18, %s19
      %p23 = pneg %p17
      %p24 = scmp.eq.s32.totalorder %s8, 1
      %p25 = por %p23, %p24
      %p26 = scmp.ne.s32.totalorder %s18, %s21
      %p27 = scmp.eq.s32.totalorder %s8, 0
      %p28 = por %p26, %p27
      %p29 = scmp.ne.s32.totalorder %s18, %s21
      %p30 = scmp.eq.s32.totalorder %s13, 1
      %p31 = por %p29, %p30
      %p32 = scmp.ne.s32.totalorder %s21, %s22
      %p33 = scmp.eq.s32.totalorder %s13, 0
      %p34 = por %p32, %p33
      %p35 = scmp.ne.s32.totalorder %s21, %s22
      %p36 = scmp.eq.s32.totalorder %s14, 1
      %p37 = por %p35, %p36
      %p39 = scmp.ne.s32.totalorder %s22, %s38
      %p40 = scmp.eq.s32.totalorder %s14, 0
      %p41 = por %p39, %p40
      %s43 = sadd.s32 %s42, 1
      %p46 = scmp.eq.s32.totalorder %s8, 1
      %p47 = scmp.ne.s32.totalorder %s42, %s44
      %p48 = scmp.eq.s32.totalorder %s8, 0
      %p49 = por %p47, %p48
      %p50 = scmp.ne.s32.totalorder %s42, %s44
      %p51 = scmp.eq.s32.totalorder %s13, 1
      %p52 = por %p50, %p51
      %p53 = scmp.ne.s32.totalorder %s44, %s45
      %p54 = scmp.eq.s32.totalorder %s13, 0
      %p55 = por %p53, %p54
      %p56 = scmp.ne.s32.totalorder %s44, %s45
      %p57 = scmp.eq.s32.totalorder %s14, 1
      %p58 = por %p56, %p57
      %p60 = scmp.ne.s32.totalorder %s45, %s59
      %p61 = scmp.eq.s32.totalorder %s14, 0
      %p62 = por %p60, %p61
      %s63 = ssub.s32 %s8, %s15
      %p64 = scmp.eq.s32.totalorder %s63, 0
      %s66 = sadd.s32 %s65, 1
      %s67 = scalar_select %p64, %s65, %s66
      %p70 = pneg %p64
      %p71 = scmp.eq.s32.totalorder %s8, 1
      %p72 = por %p70, %p71
      %p73 = scmp.ne.s32.totalorder %s65, %s68
      %p74 = scmp.eq.s32.totalorder %s8, 0
      %p75 = por %p73, %p74
      %p76 = scmp.ne.s32.totalorder %s65, %s68
      %p77 = scmp.eq.s32.totalorder %s13, 1
      %p78 = por %p76, %p77
      %p79 = scmp.ne.s32.totalorder %s68, %s69
      %p80 = scmp.eq.s32.totalorder %s13, 0
      %p81 = por %p79, %p80
      %p82 = scmp.ne.s32.totalorder %s68, %s69
      %p83 = scmp.eq.s32.totalorder %s14, 1
      %p84 = por %p82, %p83
      %p86 = scmp.ne.s32.totalorder %s69, %s85
      %p87 = scmp.eq.s32.totalorder %s14, 0
      %p88 = por %p86, %p87
      %p89 = scmp.le.s32.totalorder 1, %s8
      %p90 = scmp.lt.s32.totalorder %s8, 3
      %p91 = pnand %p89, %p90
      %p92 = pneg %p91
      // Predicated region
      $region9: #{tpu_custom_call.1} parent=5 // pred_check
        _
      $region10: #{tpu_custom_call.1} parent=5 // pred_check_branch
        %94 = sbr.rel (%p91) target = $region12
      $region11: #{tpu_custom_call.1} parent=5 // pred_region
        %s95 = ssub.s32 %s8, 1
        // Predicated region
        $region13: #{tpu_custom_call.1} parent=11 // pred_check
          %p96 = pneg %p55
        $region14: #{tpu_custom_call.1} parent=11 // pred_check_branch
          %98 = sbr.rel (%p96) target = $region16
        $region15: #{tpu_custom_call.1} parent=11 // pred_region
          _
        $region16: #{tpu_custom_call.1} parent=11 // pred_fallthru
          _
      $region12: #{tpu_custom_call.1} parent=5 // pred_fallthru
        _
      %p99 = scmp.lt.s32.totalorder %s8, 2
      // Predicated region
      $region17: #{tpu_custom_call.1} parent=5 // pred_check
        %p100 = pneg %p99
      $region18: #{tpu_custom_call.1} parent=5 // pred_check_branch
        %102 = sbr.rel (%p100) target = $region20
      $region19: #{tpu_custom_call.1} parent=5 // pred_region
        // Predicated region
        $region21: #{tpu_custom_call.1} parent=19 // pred_check
          %p103 = pneg %p28
        $region22: #{tpu_custom_call.1} parent=19 // pred_check_branch
          %105 = sbr.rel (%p103) target = $region24
        $region23: #{tpu_custom_call.1} parent=19 // pred_region
          %s106 = smul.u32 64, %s8
          %s107 = ssub.s32 120, %s106
          %p108 = scmp.lt.s32.totalorder %s107, 64
          %s109 = scalar_select %p108, %s107, 64
          %s110 = smul.u32 64, %s109
          %p111 = scmp.lt.s32.totalorder %s106, 119
          %s112 = scalar_select %p111, %s106, 119
          %s113 = smul.addr %s112, 4
          %s114 = scalar_lea.vmem %s0, %s113
          %s115 = smul.u32 64, %s8
          %s116 = ssub.s32 120, %s115
          %p117 = scmp.lt.s32.totalorder %s116, 64
          %s118 = scalar_select %p117, %s116, 64
          %s119 = smul.u32 64, %s118
        $region24: #{tpu_custom_call.1} parent=19 // pred_fallthru
          _
      $region20: #{tpu_custom_call.1} parent=5 // pred_fallthru
        _
      %p120 = scmp.le.s32.totalorder 1, %s8
      %p121 = scmp.lt.s32.totalorder %s8, 3
      %p122 = pnand %p120, %p121
      %p123 = pneg %p122
      // Predicated region
      $region25: #{tpu_custom_call.1} parent=5 // pred_check
        _
      $region26: #{tpu_custom_call.1} parent=5 // pred_check_branch
        %125 = sbr.rel (%p122) target = $region28
      $region27: #{tpu_custom_call.1} parent=5 // pred_region
        %s126 = ssub.s32 %s8, 1
        %s127 = smul.u32 64, %s13
        %s128 = ssub.s32 120, %s127
        %p129 = scmp.lt.s32.totalorder %s128, 64
        %s130 = scalar_select %p129, %s128, 64
        %s131 = smul.u32 64, %s130
        %p132 = scmp.lt.s32.totalorder %s127, 119
        %s133 = scalar_select %p132, %s127, 119
        %s134 = smul.addr %s133, 4
        %s135 = scalar_lea.vmem %s0, %s134
        %p136 = pneg %p34
        %p137 = pneg %p31
        %p138 = pneg %p55
        %p139 = pneg %p52
        %p140 = pneg %p81
        %p141 = pneg %p78
        %s142 = sand.u32 %s68, 1
        %s143 = sand.u32 %s68, 1
        %s144 = smul.addr %s143, 256
        %s145 = scalar_lea.vmem [#allocation2], %s144
        %s146 = smul.u32 64, %s13
        %s147 = ssub.s32 120, %s146
        %p148 = scmp.lt.s32.totalorder %s147, 64
        %s149 = scalar_select %p148, %s147, 64
        %s150 = smul.u32 64, %s149
        %p151 = scmp.lt.s32.totalorder %s146, 119
        %s152 = scalar_select %p151, %s146, 119
        %s153 = smul.addr %s152, 4
        %s154 = scalar_lea.vmem %s0, %s153
        %s155 = smul.u32 64, %s13
        %s156 = ssub.s32 120, %s155
        %p157 = scmp.lt.s32.totalorder %s156, 64
        %s158 = scalar_select %p157, %s156, 64
        %s159 = smul.u32 64, %s158
        %s160 = smul.u32 64, %s13
        %s161 = ssub.s32 120, %s160
        %p162 = scmp.lt.s32.totalorder %s161, 64
        %s163 = scalar_select %p162, %s161, 64
        %s164 = smul.u32 64, %s163
        %v166 = vld [vmem:[%s154] sm:$0xf]
        %v167 = vld [vmem:[%s154 + $0x4] sm:$0xf]
        %v168 = vld [vmem:[%s154 + $0x8] sm:$0xf]
        %v169 = vld [vmem:[%s154 + $0xc] sm:$0xf]
        %v170 = vld [vmem:[%s154 + $0x10] sm:$0xf]
        %v171 = vld [vmem:[%s154 + $0x14] sm:$0xf]
        %v172 = vld [vmem:[%s154 + $0x18] sm:$0xf]
        %v173 = vld [vmem:[%s154 + $0x1c] sm:$0xf]
        %v174 = vld [vmem:[%s154 + $0x20] sm:$0xf]
        %v175 = vld [vmem:[%s154 + $0x24] sm:$0xf]
        %v176 = vld [vmem:[%s154 + $0x28] sm:$0xf]
        %v177 = vld [vmem:[%s154 + $0x2c] sm:$0xf]
        %v178 = vld [vmem:[%s154 + $0x30] sm:$0xf]
        %v179 = vld [vmem:[%s154 + $0x34] sm:$0xf]
        %v180 = vld [vmem:[%s154 + $0x38] sm:$0xf]
        %v181 = vld [vmem:[%s154 + $0x3c] sm:$0xf]
        %v182 = vld [vmem:[%s154 + $0x40] sm:$0xf]
        %v183 = vld [vmem:[%s154 + $0x44] sm:$0xf]
        %v184 = vld [vmem:[%s154 + $0x48] sm:$0xf]
        %v185 = vld [vmem:[%s154 + $0x4c] sm:$0xf]
        %v186 = vld [vmem:[%s154 + $0x50] sm:$0xf]
        %v187 = vld [vmem:[%s154 + $0x54] sm:$0xf]
        %v188 = vld [vmem:[%s154 + $0x58] sm:$0xf]
        %v189 = vld [vmem:[%s154 + $0x5c] sm:$0xf]
        %v190 = vld [vmem:[%s154 + $0x60] sm:$0xf]
        %v191 = vld [vmem:[%s154 + $0x64] sm:$0xf]
        %v192 = vld [vmem:[%s154 + $0x68] sm:$0xf]
        %v193 = vld [vmem:[%s154 + $0x6c] sm:$0xf]
        %v194 = vld [vmem:[%s154 + $0x70] sm:$0xf]
        %v195 = vld [vmem:[%s154 + $0x74] sm:$0xf]
        %v196 = vld [vmem:[%s154 + $0x78] sm:$0xf]
        %v197 = vld [vmem:[%s154 + $0x7c] sm:$0xf]
        %v198 = vld [vmem:[%s154 + $0x80] sm:$0xf]
        %v199 = vld [vmem:[%s154 + $0x84] sm:$0xf]
        %v200 = vld [vmem:[%s154 + $0x88] sm:$0xf]
        %v201 = vld [vmem:[%s154 + $0x8c] sm:$0xf]
        %v202 = vld [vmem:[%s154 + $0x90] sm:$0xf]
        %v203 = vld [vmem:[%s154 + $0x94] sm:$0xf]
        %v204 = vld [vmem:[%s154 + $0x98] sm:$0xf]
        %v205 = vld [vmem:[%s154 + $0x9c] sm:$0xf]
        %v206 = vld [vmem:[%s154 + $0xa0] sm:$0xf]
        %v207 = vld [vmem:[%s154 + $0xa4] sm:$0xf]
        %v208 = vld [vmem:[%s154 + $0xa8] sm:$0xf]
        %v209 = vld [vmem:[%s154 + $0xac] sm:$0xf]
        %v210 = vld [vmem:[%s154 + $0xb0] sm:$0xf]
        %v211 = vld [vmem:[%s154 + $0xb4] sm:$0xf]
        %v212 = vld [vmem:[%s154 + $0xb8] sm:$0xf]
        %v213 = vld [vmem:[%s154 + $0xbc] sm:$0xf]
        %v214 = vld [vmem:[%s154 + $0xc0] sm:$0xf]
        %v215 = vld [vmem:[%s154 + $0xc4] sm:$0xf]
        %v216 = vld [vmem:[%s154 + $0xc8] sm:$0xf]
        %v217 = vld [vmem:[%s154 + $0xcc] sm:$0xf]
        %v218 = vld [vmem:[%s154 + $0xd0] sm:$0xf]
        %v219 = vld [vmem:[%s154 + $0xd4] sm:$0xf]
        %v220 = vld [vmem:[%s154 + $0xd8] sm:$0xf]
        %v221 = vld [vmem:[%s154 + $0xdc] sm:$0xf]
        %v222 = vld [vmem:[%s154 + $0xe0] sm:$0xf]
        %v223 = vld [vmem:[%s154 + $0xe4] sm:$0xf]
        %v224 = vld [vmem:[%s154 + $0xe8] sm:$0xf]
        %v225 = vld [vmem:[%s154 + $0xec] sm:$0xf]
        %v226 = vld [vmem:[%s154 + $0xf0] sm:$0xf]
        %v227 = vld [vmem:[%s154 + $0xf4] sm:$0xf]
        %v228 = vld [vmem:[%s154 + $0xf8] sm:$0xf]
        %v229 = vld [vmem:[%s154 + $0xfc] sm:$0xf]
        %v230 = vld [vmem:[%s1] sm:$0xf]
        %v231 = vld [vmem:[%s1 + $0x4] sm:$0xf]
        %v296 = vunpack.c.l.b16 %v166
        %v297 = vunpack.c.l.b16 %v167
        %v298 = vunpack.c.l.b16 %v168
        %v299 = vunpack.c.l.b16 %v169
        %v300 = vunpack.c.l.b16 %v170
        %v301 = vunpack.c.l.b16 %v171
        %v302 = vunpack.c.l.b16 %v172
        %v303 = vunpack.c.l.b16 %v173
        %v304 = vunpack.c.l.b16 %v174
        %v305 = vunpack.c.l.b16 %v175
        %v306 = vunpack.c.l.b16 %v176
        %v307 = vunpack.c.l.b16 %v177
        %v308 = vunpack.c.l.b16 %v178
        %v309 = vunpack.c.l.b16 %v179
        %v310 = vunpack.c.l.b16 %v180
        %v311 = vunpack.c.l.b16 %v181
        %v312 = vunpack.c.l.b16 %v182
        %v313 = vunpack.c.l.b16 %v183
        %v314 = vunpack.c.l.b16 %v184
        %v315 = vunpack.c.l.b16 %v185
        %v316 = vunpack.c.l.b16 %v186
        %v317 = vunpack.c.l.b16 %v187
        %v318 = vunpack.c.l.b16 %v188
        %v319 = vunpack.c.l.b16 %v189
        %v320 = vunpack.c.l.b16 %v190
        %v321 = vunpack.c.l.b16 %v191
        %v322 = vunpack.c.l.b16 %v192
        %v323 = vunpack.c.l.b16 %v193
        %v324 = vunpack.c.l.b16 %v194
        %v325 = vunpack.c.l.b16 %v195
        %v326 = vunpack.c.l.b16 %v196
        %v327 = vunpack.c.l.b16 %v197
        %v328 = vunpack.c.l.b16 %v198
        %v329 = vunpack.c.l.b16 %v199
        %v330 = vunpack.c.l.b16 %v200
        %v331 = vunpack.c.l.b16 %v201
        %v332 = vunpack.c.l.b16 %v202
        %v333 = vunpack.c.l.b16 %v203
        %v334 = vunpack.c.l.b16 %v204
        %v335 = vunpack.c.l.b16 %v205
        %v336 = vunpack.c.l.b16 %v206
        %v337 = vunpack.c.l.b16 %v207
        %v338 = vunpack.c.l.b16 %v208
        %v339 = vunpack.c.l.b16 %v209
        %v340 = vunpack.c.l.b16 %v210
        %v341 = vunpack.c.l.b16 %v211
        %v342 = vunpack.c.l.b16 %v212
        %v343 = vunpack.c.l.b16 %v213
        %v344 = vunpack.c.l.b16 %v214
        %v345 = vunpack.c.l.b16 %v215
        %v346 = vunpack.c.l.b16 %v216
        %v347 = vunpack.c.l.b16 %v217
        %v348 = vunpack.c.l.b16 %v218
        %v349 = vunpack.c.l.b16 %v219
        %v350 = vunpack.c.l.b16 %v220
        %v351 = vunpack.c.l.b16 %v221
        %v352 = vunpack.c.l.b16 %v222
        %v353 = vunpack.c.l.b16 %v223
        %v354 = vunpack.c.l.b16 %v224
        %v355 = vunpack.c.l.b16 %v225
        %v356 = vunpack.c.l.b16 %v226
        %v357 = vunpack.c.l.b16 %v227
        %v358 = vunpack.c.l.b16 %v228
        %v359 = vunpack.c.l.b16 %v229
        %v360 = vpack.c.b16 %v297, %v296
        %v361 = vpack.c.b16 %v299, %v298
        %v362 = vpack.c.b16 %v301, %v300
        %v363 = vpack.c.b16 %v303, %v302
        %v364 = vpack.c.b16 %v305, %v304
        %v365 = vpack.c.b16 %v307, %v306
        %v366 = vpack.c.b16 %v309, %v308
        %v367 = vpack.c.b16 %v311, %v310
        %v368 = vpack.c.b16 %v313, %v312
        %v369 = vpack.c.b16 %v315, %v314
        %v370 = vpack.c.b16 %v317, %v316
        %v371 = vpack.c.b16 %v319, %v318
        %v372 = vpack.c.b16 %v321, %v320
        %v373 = vpack.c.b16 %v323, %v322
        %v374 = vpack.c.b16 %v325, %v324
        %v375 = vpack.c.b16 %v327, %v326
        %v376 = vpack.c.b16 %v329, %v328
        %v377 = vpack.c.b16 %v331, %v330
        %v378 = vpack.c.b16 %v333, %v332
        %v379 = vpack.c.b16 %v335, %v334
        %v380 = vpack.c.b16 %v337, %v336
        %v381 = vpack.c.b16 %v339, %v338
        %v382 = vpack.c.b16 %v341, %v340
        %v383 = vpack.c.b16 %v343, %v342
        %v384 = vpack.c.b16 %v345, %v344
        %v385 = vpack.c.b16 %v347, %v346
        %v386 = vpack.c.b16 %v349, %v348
        %v387 = vpack.c.b16 %v351, %v350
        %v388 = vpack.c.b16 %v353, %v352
        %v389 = vpack.c.b16 %v355, %v354
        %v390 = vpack.c.b16 %v357, %v356
        %v391 = vpack.c.b16 %v359, %v358
        %v394 = vunpack.c.l.b16 %v230
        %v395 = vunpack.c.l.b16 %v231
        %v396 = vpack.c.b16 %v395, %v394
        %vm398 = vcmask 130048
        %v400 = vsel %vm398, %v360, 0
        %v403 = vsel %vm398, %v361, 0
        %v406 = vsel %vm398, %v362, 0
        %v409 = vsel %vm398, %v363, 0
        %v412 = vsel %vm398, %v364, 0
        %v415 = vsel %vm398, %v365, 0
        %v418 = vsel %vm398, %v366, 0
        %v421 = vsel %vm398, %v367, 0
        %v424 = vsel %vm398, %v368, 0
        %v427 = vsel %vm398, %v369, 0
        %v430 = vsel %vm398, %v370, 0
        %v433 = vsel %vm398, %v371, 0
        %v436 = vsel %vm398, %v372, 0
        %v439 = vsel %vm398, %v373, 0
        %v442 = vsel %vm398, %v374, 0
        %v445 = vsel %vm398, %v375, 0
        %v448 = vsel %vm398, %v376, 0
        %v451 = vsel %vm398, %v377, 0
        %v454 = vsel %vm398, %v378, 0
        %v457 = vsel %vm398, %v379, 0
        %v460 = vsel %vm398, %v380, 0
        %v463 = vsel %vm398, %v381, 0
        %v466 = vsel %vm398, %v382, 0
        %v469 = vsel %vm398, %v383, 0
        %v472 = vsel %vm398, %v384, 0
        %v475 = vsel %vm398, %v385, 0
        %v478 = vsel %vm398, %v386, 0
        %v481 = vsel %vm398, %v387, 0
        %v484 = vsel %vm398, %v388, 0
        %v487 = vsel %vm398, %v389, 0
        %v490 = vsel %vm398, %v390, 0
        %v493 = vsel %vm398, %v391, 0
        %495 = vmatprep.subr.bf16.mxu0 0
        %496 = vmatpush1.bf16.msra.mxu0 0
        %497 = vmatprep.subr.bf16.mxu0 0
        %498 = vmatpush1.bf16.msra.mxu0 0
        %499 = vmatprep.subr.bf16.mxu0 0
        %500 = vmatpush1.bf16.msra.mxu0 0
        %501 = vmatprep.subr.bf16.mxu0 0
        %502 = vmatpush1.bf16.msra.mxu0 0
        %503 = vmatprep.subr.bf16.mxu0 0
        %504 = vmatpush1.bf16.msra.mxu0 0
        %505 = vmatprep.subr.bf16.mxu0 0
        %506 = vmatpush1.bf16.msra.mxu0 0
        %507 = vmatprep.subr.bf16.mxu0 0
        %508 = vmatpush1.bf16.msra.mxu0 0
        %509 = vmatprep.subr.bf16.mxu0 0
        %510 = vmatpush1.bf16.msra.mxu0 %v396
        %511 = vmatprep.subr.bf16.mxu0 0
        %512 = vmatpush2.bf16.msra.mxu0 0
        %513 = vmatprep.subr.bf16.mxu0 0
        %514 = vmatpush2.bf16.msra.mxu0 0
        %515 = vmatprep.subr.bf16.mxu0 0
        %516 = vmatpush2.bf16.msra.mxu0 0
        %517 = vmatprep.subr.bf16.mxu0 0
        %518 = vmatpush2.bf16.msra.mxu0 0
        %519 = vmatprep.subr.bf16.mxu0 0
        %520 = vmatpush2.bf16.msra.mxu0 0
        %521 = vmatprep.subr.bf16.mxu0 0
        %522 = vmatpush2.bf16.msra.mxu0 0
        %523 = vmatprep.subr.bf16.mxu0 0
        %524 = vmatpush2.bf16.msra.mxu0 0
        %525 = vmatprep.subr.bf16.mxu0 0
        %526 = vmatpush2.bf16.msra.mxu0 0
        %527 = vmatprep.mubr.bf16.mxu0 0
        %528 = vmatmul.mubr.bf16.gmra.mxu0 %v400
        %v529 = vpop.f32.mrf.mxu0
        %v530 = vadd.f32 0.0, %v529
        %v531 = vpop.f32.mrf.mxu0
        %v532 = vpop.f32.mrf.mxu0
        %v533 = vadd.f32 0.0, %v532
        %v534 = vpop.f32.mrf.mxu0
        %535 = vmatprep.mubr.bf16.mxu0 0
        %536 = vmatmul.mubr.bf16.gmra.mxu0 %v403
        %v537 = vpop.f32.mrf.mxu0
        %v538 = vadd.f32 0.0, %v537
        %v539 = vpop.f32.mrf.mxu0
        %v540 = vpop.f32.mrf.mxu0
        %v541 = vadd.f32 0.0, %v540
        %v542 = vpop.f32.mrf.mxu0
        %543 = vmatprep.mubr.bf16.mxu0 0
        %544 = vmatmul.mubr.bf16.gmra.mxu0 %v406
        %v545 = vpop.f32.mrf.mxu0
        %v546 = vadd.f32 0.0, %v545
        %v547 = vpop.f32.mrf.mxu0
        %v548 = vpop.f32.mrf.mxu0
        %v549 = vadd.f32 0.0, %v548
        %v550 = vpop.f32.mrf.mxu0
        %551 = vmatprep.mubr.bf16.mxu0 0
        %552 = vmatmul.mubr.bf16.gmra.mxu0 %v409
        %v553 = vpop.f32.mrf.mxu0
        %v554 = vadd.f32 0.0, %v553
        %v555 = vpop.f32.mrf.mxu0
        %v556 = vpop.f32.mrf.mxu0
        %v557 = vadd.f32 0.0, %v556
        %v558 = vpop.f32.mrf.mxu0
        %559 = vmatprep.mubr.bf16.mxu0 0
        %560 = vmatmul.mubr.bf16.gmra.mxu0 %v412
        %v561 = vpop.f32.mrf.mxu0
        %v562 = vadd.f32 0.0, %v561
        %v563 = vpop.f32.mrf.mxu0
        %v564 = vpop.f32.mrf.mxu0
        %v565 = vadd.f32 0.0, %v564
        %v566 = vpop.f32.mrf.mxu0
        %567 = vmatprep.mubr.bf16.mxu0 0
        %568 = vmatmul.mubr.bf16.gmra.mxu0 %v415
        %v569 = vpop.f32.mrf.mxu0
        %v570 = vadd.f32 0.0, %v569
        %v571 = vpop.f32.mrf.mxu0
        %v572 = vpop.f32.mrf.mxu0
        %v573 = vadd.f32 0.0, %v572
        %v574 = vpop.f32.mrf.mxu0
        %575 = vmatprep.mubr.bf16.mxu0 0
        %576 = vmatmul.mubr.bf16.gmra.mxu0 %v418
        %v577 = vpop.f32.mrf.mxu0
        %v578 = vadd.f32 0.0, %v577
        %v579 = vpop.f32.mrf.mxu0
        %v580 = vpop.f32.mrf.mxu0
        %v581 = vadd.f32 0.0, %v580
        %v582 = vpop.f32.mrf.mxu0
        %583 = vmatprep.mubr.bf16.mxu0 0
        %584 = vmatmul.mubr.bf16.gmra.mxu0 %v421
        %v585 = vpop.f32.mrf.mxu0
        %v586 = vadd.f32 0.0, %v585
        %v587 = vpop.f32.mrf.mxu0
        %v588 = vpop.f32.mrf.mxu0
        %v589 = vadd.f32 0.0, %v588
        %v590 = vpop.f32.mrf.mxu0
        %591 = vmatprep.mubr.bf16.mxu0 0
        %592 = vmatmul.mubr.bf16.gmra.mxu0 %v424
        %v593 = vpop.f32.mrf.mxu0
        %v594 = vadd.f32 0.0, %v593
        %v595 = vpop.f32.mrf.mxu0
        %v596 = vpop.f32.mrf.mxu0
        %v597 = vadd.f32 0.0, %v596
        %v598 = vpop.f32.mrf.mxu0
        %599 = vmatprep.mubr.bf16.mxu0 0
        %600 = vmatmul.mubr.bf16.gmra.mxu0 %v427
        %v601 = vpop.f32.mrf.mxu0
        %v602 = vadd.f32 0.0, %v601
        %v603 = vpop.f32.mrf.mxu0
        %v604 = vpop.f32.mrf.mxu0
        %v605 = vadd.f32 0.0, %v604
        %v606 = vpop.f32.mrf.mxu0
        %607 = vmatprep.mubr.bf16.mxu0 0
        %608 = vmatmul.mubr.bf16.gmra.mxu0 %v430
        %v609 = vpop.f32.mrf.mxu0
        %v610 = vadd.f32 0.0, %v609
        %v611 = vpop.f32.mrf.mxu0
        %v612 = vpop.f32.mrf.mxu0
        %v613 = vadd.f32 0.0, %v612
        %v614 = vpop.f32.mrf.mxu0
        %615 = vmatprep.mubr.bf16.mxu0 0
        %616 = vmatmul.mubr.bf16.gmra.mxu0 %v433
        %v617 = vpop.f32.mrf.mxu0
        %v618 = vadd.f32 0.0, %v617
        %v619 = vpop.f32.mrf.mxu0
        %v620 = vpop.f32.mrf.mxu0
        %v621 = vadd.f32 0.0, %v620
        %v622 = vpop.f32.mrf.mxu0
        %623 = vmatprep.mubr.bf16.mxu0 0
        %624 = vmatmul.mubr.bf16.gmra.mxu0 %v436
        %v625 = vpop.f32.mrf.mxu0
        %v626 = vadd.f32 0.0, %v625
        %v627 = vpop.f32.mrf.mxu0
        %v628 = vpop.f32.mrf.mxu0
        %v629 = vadd.f32 0.0, %v628
        %v630 = vpop.f32.mrf.mxu0
        %631 = vmatprep.mubr.bf16.mxu0 0
        %632 = vmatmul.mubr.bf16.gmra.mxu0 %v439
        %v633 = vpop.f32.mrf.mxu0
        %v634 = vadd.f32 0.0, %v633
        %v635 = vpop.f32.mrf.mxu0
        %v636 = vpop.f32.mrf.mxu0
        %v637 = vadd.f32 0.0, %v636
        %v638 = vpop.f32.mrf.mxu0
        %639 = vmatprep.mubr.bf16.mxu0 0
        %640 = vmatmul.mubr.bf16.gmra.mxu0 %v442
        %v641 = vpop.f32.mrf.mxu0
        %v642 = vadd.f32 0.0, %v641
        %v643 = vpop.f32.mrf.mxu0
        %v644 = vpop.f32.mrf.mxu0
        %v645 = vadd.f32 0.0, %v644
        %v646 = vpop.f32.mrf.mxu0
        %647 = vmatprep.mubr.bf16.mxu0 0
        %648 = vmatmul.mubr.bf16.gmra.mxu0 %v445
        %v649 = vpop.f32.mrf.mxu0
        %v650 = vadd.f32 0.0, %v649
        %v651 = vpop.f32.mrf.mxu0
        %v652 = vpop.f32.mrf.mxu0
        %v653 = vadd.f32 0.0, %v652
        %v654 = vpop.f32.mrf.mxu0
        %655 = vmatprep.mubr.bf16.mxu0 0
        %656 = vmatmul.mubr.bf16.gmra.mxu0 %v448
        %v657 = vpop.f32.mrf.mxu0
        %v658 = vadd.f32 0.0, %v657
        %v659 = vpop.f32.mrf.mxu0
        %v660 = vpop.f32.mrf.mxu0
        %v661 = vadd.f32 0.0, %v660
        %v662 = vpop.f32.mrf.mxu0
        %663 = vmatprep.mubr.bf16.mxu0 0
        %664 = vmatmul.mubr.bf16.gmra.mxu0 %v451
        %v665 = vpop.f32.mrf.mxu0
        %v666 = vadd.f32 0.0, %v665
        %v667 = vpop.f32.mrf.mxu0
        %v668 = vpop.f32.mrf.mxu0
        %v669 = vadd.f32 0.0, %v668
        %v670 = vpop.f32.mrf.mxu0
        %671 = vmatprep.mubr.bf16.mxu0 0
        %672 = vmatmul.mubr.bf16.gmra.mxu0 %v454
        %v673 = vpop.f32.mrf.mxu0
        %v674 = vadd.f32 0.0, %v673
        %v675 = vpop.f32.mrf.mxu0
        %v676 = vpop.f32.mrf.mxu0
        %v677 = vadd.f32 0.0, %v676
        %v678 = vpop.f32.mrf.mxu0
        %679 = vmatprep.mubr.bf16.mxu0 0
        %680 = vmatmul.mubr.bf16.gmra.mxu0 %v457
        %v681 = vpop.f32.mrf.mxu0
        %v682 = vadd.f32 0.0, %v681
        %v683 = vpop.f32.mrf.mxu0
        %v684 = vpop.f32.mrf.mxu0
        %v685 = vadd.f32 0.0, %v684
        %v686 = vpop.f32.mrf.mxu0
        %687 = vmatprep.mubr.bf16.mxu0 0
        %688 = vmatmul.mubr.bf16.gmra.mxu0 %v460
        %v689 = vpop.f32.mrf.mxu0
        %v690 = vadd.f32 0.0, %v689
        %v691 = vpop.f32.mrf.mxu0
        %v692 = vpop.f32.mrf.mxu0
        %v693 = vadd.f32 0.0, %v692
        %v694 = vpop.f32.mrf.mxu0
        %695 = vmatprep.mubr.bf16.mxu0 0
        %696 = vmatmul.mubr.bf16.gmra.mxu0 %v463
        %v697 = vpop.f32.mrf.mxu0
        %v698 = vadd.f32 0.0, %v697
        %v699 = vpop.f32.mrf.mxu0
        %v700 = vpop.f32.mrf.mxu0
        %v701 = vadd.f32 0.0, %v700
        %v702 = vpop.f32.mrf.mxu0
        %703 = vmatprep.mubr.bf16.mxu0 0
        %704 = vmatmul.mubr.bf16.gmra.mxu0 %v466
        %v705 = vpop.f32.mrf.mxu0
        %v706 = vadd.f32 0.0, %v705
        %v707 = vpop.f32.mrf.mxu0
        %v708 = vpop.f32.mrf.mxu0
        %v709 = vadd.f32 0.0, %v708
        %v710 = vpop.f32.mrf.mxu0
        %711 = vmatprep.mubr.bf16.mxu0 0
        %712 = vmatmul.mubr.bf16.gmra.mxu0 %v469
        %v713 = vpop.f32.mrf.mxu0
        %v714 = vadd.f32 0.0, %v713
        %v715 = vpop.f32.mrf.mxu0
        %v716 = vpop.f32.mrf.mxu0
        %v717 = vadd.f32 0.0, %v716
        %v718 = vpop.f32.mrf.mxu0
        %719 = vmatprep.mubr.bf16.mxu0 0
        %720 = vmatmul.mubr.bf16.gmra.mxu0 %v472
        %v721 = vpop.f32.mrf.mxu0
        %v722 = vadd.f32 0.0, %v721
        %v723 = vpop.f32.mrf.mxu0
        %v724 = vpop.f32.mrf.mxu0
        %v725 = vadd.f32 0.0, %v724
        %v726 = vpop.f32.mrf.mxu0
        %727 = vmatprep.mubr.bf16.mxu0 0
        %728 = vmatmul.mubr.bf16.gmra.mxu0 %v475
        %v729 = vpop.f32.mrf.mxu0
        %v730 = vadd.f32 0.0, %v729
        %v731 = vpop.f32.mrf.mxu0
        %v732 = vpop.f32.mrf.mxu0
        %v733 = vadd.f32 0.0, %v732
        %v734 = vpop.f32.mrf.mxu0
        %735 = vmatprep.mubr.bf16.mxu0 0
        %736 = vmatmul.mubr.bf16.gmra.mxu0 %v478
        %v737 = vpop.f32.mrf.mxu0
        %v738 = vadd.f32 0.0, %v737
        %v739 = vpop.f32.mrf.mxu0
        %v740 = vpop.f32.mrf.mxu0
        %v741 = vadd.f32 0.0, %v740
        %v742 = vpop.f32.mrf.mxu0
        %743 = vmatprep.mubr.bf16.mxu0 0
        %744 = vmatmul.mubr.bf16.gmra.mxu0 %v481
        %v745 = vpop.f32.mrf.mxu0
        %v746 = vadd.f32 0.0, %v745
        %v747 = vpop.f32.mrf.mxu0
        %v748 = vpop.f32.mrf.mxu0
        %v749 = vadd.f32 0.0, %v748
        %v750 = vpop.f32.mrf.mxu0
        %751 = vmatprep.mubr.bf16.mxu0 0
        %752 = vmatmul.mubr.bf16.gmra.mxu0 %v484
        %v753 = vpop.f32.mrf.mxu0
        %v754 = vadd.f32 0.0, %v753
        %v755 = vpop.f32.mrf.mxu0
        %v756 = vpop.f32.mrf.mxu0
        %v757 = vadd.f32 0.0, %v756
        %v758 = vpop.f32.mrf.mxu0
        %759 = vmatprep.mubr.bf16.mxu0 0
        %760 = vmatmul.mubr.bf16.gmra.mxu0 %v487
        %v761 = vpop.f32.mrf.mxu0
        %v762 = vadd.f32 0.0, %v761
        %v763 = vpop.f32.mrf.mxu0
        %v764 = vpop.f32.mrf.mxu0
        %v765 = vadd.f32 0.0, %v764
        %v766 = vpop.f32.mrf.mxu0
        %767 = vmatprep.mubr.bf16.mxu0 0
        %768 = vmatmul.mubr.bf16.gmra.mxu0 %v490
        %v769 = vpop.f32.mrf.mxu0
        %v770 = vadd.f32 0.0, %v769
        %v771 = vpop.f32.mrf.mxu0
        %v772 = vpop.f32.mrf.mxu0
        %v773 = vadd.f32 0.0, %v772
        %v774 = vpop.f32.mrf.mxu0
        %775 = vmatprep.mubr.bf16.mxu0 0
        %776 = vmatmul.mubr.bf16.gmra.mxu0 %v493
        %v777 = vpop.f32.mrf.mxu0
        %v778 = vadd.f32 0.0, %v777
        %v779 = vpop.f32.mrf.mxu0
        %v780 = vpop.f32.mrf.mxu0
        %v781 = vadd.f32 0.0, %v780
        %v782 = vpop.f32.mrf.mxu0
        %783 = vdwg.mxu0
        %v784 = vpack.c.bf16 %v533, %v530
        %v785 = vpack.c.bf16 %v541, %v538
        %v786 = vpack.c.bf16 %v549, %v546
        %v787 = vpack.c.bf16 %v557, %v554
        %v788 = vpack.c.bf16 %v565, %v562
        %v789 = vpack.c.bf16 %v573, %v570
        %v790 = vpack.c.bf16 %v581, %v578
        %v791 = vpack.c.bf16 %v589, %v586
        %v792 = vpack.c.bf16 %v597, %v594
        %v793 = vpack.c.bf16 %v605, %v602
        %v794 = vpack.c.bf16 %v613, %v610
        %v795 = vpack.c.bf16 %v621, %v618
        %v796 = vpack.c.bf16 %v629, %v626
        %v797 = vpack.c.bf16 %v637, %v634
        %v798 = vpack.c.bf16 %v645, %v642
        %v799 = vpack.c.bf16 %v653, %v650
        %v800 = vpack.c.bf16 %v661, %v658
        %v801 = vpack.c.bf16 %v669, %v666
        %v802 = vpack.c.bf16 %v677, %v674
        %v803 = vpack.c.bf16 %v685, %v682
        %v804 = vpack.c.bf16 %v693, %v690
        %v805 = vpack.c.bf16 %v701, %v698
        %v806 = vpack.c.bf16 %v709, %v706
        %v807 = vpack.c.bf16 %v717, %v714
        %v808 = vpack.c.bf16 %v725, %v722
        %v809 = vpack.c.bf16 %v733, %v730
        %v810 = vpack.c.bf16 %v741, %v738
        %v811 = vpack.c.bf16 %v749, %v746
        %v812 = vpack.c.bf16 %v757, %v754
        %v813 = vpack.c.bf16 %v765, %v762
        %v814 = vpack.c.bf16 %v773, %v770
        %v815 = vpack.c.bf16 %v781, %v778
        %v848 = vunpack.c.l.b16 %v784
        %v849 = vunpack.c.h.b16 %v784
        %v850 = vunpack.c.l.b16 %v785
        %v851 = vunpack.c.h.b16 %v785
        %v852 = vunpack.c.l.b16 %v786
        %v853 = vunpack.c.h.b16 %v786
        %v854 = vunpack.c.l.b16 %v787
        %v855 = vunpack.c.h.b16 %v787
        %v856 = vunpack.c.l.b16 %v788
        %v857 = vunpack.c.h.b16 %v788
        %v858 = vunpack.c.l.b16 %v789
        %v859 = vunpack.c.h.b16 %v789
        %v860 = vunpack.c.l.b16 %v790
        %v861 = vunpack.c.h.b16 %v790
        %v862 = vunpack.c.l.b16 %v791
        %v863 = vunpack.c.h.b16 %v791
        %v864 = vunpack.c.l.b16 %v792
        %v865 = vunpack.c.h.b16 %v792
        %v866 = vunpack.c.l.b16 %v793
        %v867 = vunpack.c.h.b16 %v793
        %v868 = vunpack.c.l.b16 %v794
        %v869 = vunpack.c.h.b16 %v794
        %v870 = vunpack.c.l.b16 %v795
        %v871 = vunpack.c.h.b16 %v795
        %v872 = vunpack.c.l.b16 %v796
        %v873 = vunpack.c.h.b16 %v796
        %v874 = vunpack.c.l.b16 %v797
        %v875 = vunpack.c.h.b16 %v797
        %v876 = vunpack.c.l.b16 %v798
        %v877 = vunpack.c.h.b16 %v798
        %v878 = vunpack.c.l.b16 %v799
        %v879 = vunpack.c.h.b16 %v799
        %v880 = vunpack.c.l.b16 %v800
        %v881 = vunpack.c.h.b16 %v800
        %v882 = vunpack.c.l.b16 %v801
        %v883 = vunpack.c.h.b16 %v801
        %v884 = vunpack.c.l.b16 %v802
        %v885 = vunpack.c.h.b16 %v802
        %v886 = vunpack.c.l.b16 %v803
        %v887 = vunpack.c.h.b16 %v803
        %v888 = vunpack.c.l.b16 %v804
        %v889 = vunpack.c.h.b16 %v804
        %v890 = vunpack.c.l.b16 %v805
        %v891 = vunpack.c.h.b16 %v805
        %v892 = vunpack.c.l.b16 %v806
        %v893 = vunpack.c.h.b16 %v806
        %v894 = vunpack.c.l.b16 %v807
        %v895 = vunpack.c.h.b16 %v807
        %v896 = vunpack.c.l.b16 %v808
        %v897 = vunpack.c.h.b16 %v808
        %v898 = vunpack.c.l.b16 %v809
        %v899 = vunpack.c.h.b16 %v809
        %v900 = vunpack.c.l.b16 %v810
        %v901 = vunpack.c.h.b16 %v810
        %v902 = vunpack.c.l.b16 %v811
        %v903 = vunpack.c.h.b16 %v811
        %v904 = vunpack.c.l.b16 %v812
        %v905 = vunpack.c.h.b16 %v812
        %v906 = vunpack.c.l.b16 %v813
        %v907 = vunpack.c.h.b16 %v813
        %v908 = vunpack.c.l.b16 %v814
        %v909 = vunpack.c.h.b16 %v814
        %v910 = vunpack.c.l.b16 %v815
        %v911 = vunpack.c.h.b16 %v815
        %v912 = vpack.c.b16 %v848, %v848
        %v913 = vpack.c.b16 %v849, %v849
        %v914 = vpack.c.b16 %v850, %v850
        %v915 = vpack.c.b16 %v851, %v851
        %v916 = vpack.c.b16 %v852, %v852
        %v917 = vpack.c.b16 %v853, %v853
        %v918 = vpack.c.b16 %v854, %v854
        %v919 = vpack.c.b16 %v855, %v855
        %v920 = vpack.c.b16 %v856, %v856
        %v921 = vpack.c.b16 %v857, %v857
        %v922 = vpack.c.b16 %v858, %v858
        %v923 = vpack.c.b16 %v859, %v859
        %v924 = vpack.c.b16 %v860, %v860
        %v925 = vpack.c.b16 %v861, %v861
        %v926 = vpack.c.b16 %v862, %v862
        %v927 = vpack.c.b16 %v863, %v863
        %v928 = vpack.c.b16 %v864, %v864
        %v929 = vpack.c.b16 %v865, %v865
        %v930 = vpack.c.b16 %v866, %v866
        %v931 = vpack.c.b16 %v867, %v867
        %v932 = vpack.c.b16 %v868, %v868
        %v933 = vpack.c.b16 %v869, %v869
        %v934 = vpack.c.b16 %v870, %v870
        %v935 = vpack.c.b16 %v871, %v871
        %v936 = vpack.c.b16 %v872, %v872
        %v937 = vpack.c.b16 %v873, %v873
        %v938 = vpack.c.b16 %v874, %v874
        %v939 = vpack.c.b16 %v875, %v875
        %v940 = vpack.c.b16 %v876, %v876
        %v941 = vpack.c.b16 %v877, %v877
        %v942 = vpack.c.b16 %v878, %v878
        %v943 = vpack.c.b16 %v879, %v879
        %v944 = vpack.c.b16 %v880, %v880
        %v945 = vpack.c.b16 %v881, %v881
        %v946 = vpack.c.b16 %v882, %v882
        %v947 = vpack.c.b16 %v883, %v883
        %v948 = vpack.c.b16 %v884, %v884
        %v949 = vpack.c.b16 %v885, %v885
        %v950 = vpack.c.b16 %v886, %v886
        %v951 = vpack.c.b16 %v887, %v887
        %v952 = vpack.c.b16 %v888, %v888
        %v953 = vpack.c.b16 %v889, %v889
        %v954 = vpack.c.b16 %v890, %v890
        %v955 = vpack.c.b16 %v891, %v891
        %v956 = vpack.c.b16 %v892, %v892
        %v957 = vpack.c.b16 %v893, %v893
        %v958 = vpack.c.b16 %v894, %v894
        %v959 = vpack.c.b16 %v895, %v895
        %v960 = vpack.c.b16 %v896, %v896
        %v961 = vpack.c.b16 %v897, %v897
        %v962 = vpack.c.b16 %v898, %v898
        %v963 = vpack.c.b16 %v899, %v899
        %v964 = vpack.c.b16 %v900, %v900
        %v965 = vpack.c.b16 %v901, %v901
        %v966 = vpack.c.b16 %v902, %v902
        %v967 = vpack.c.b16 %v903, %v903
        %v968 = vpack.c.b16 %v904, %v904
        %v969 = vpack.c.b16 %v905, %v905
        %v970 = vpack.c.b16 %v906, %v906
        %v971 = vpack.c.b16 %v907, %v907
        %v972 = vpack.c.b16 %v908, %v908
        %v973 = vpack.c.b16 %v909, %v909
        %v974 = vpack.c.b16 %v910, %v910
        %v975 = vpack.c.b16 %v911, %v911
        %vm1040 = vcmask 584704
        %1041 = vst.msk [vmem:[%s145] sm:$0xf] %vm1040, %v912
        %1042 = vst.msk [vmem:[%s145 + $0x4] sm:$0xf] %vm1040, %v913
        %1043 = vst.msk [vmem:[%s145 + $0x8] sm:$0xf] %vm1040, %v914
        %1044 = vst.msk [vmem:[%s145 + $0xc] sm:$0xf] %vm1040, %v915
        %1045 = vst.msk [vmem:[%s145 + $0x10] sm:$0xf] %vm1040, %v916
        %1046 = vst.msk [vmem:[%s145 + $0x14] sm:$0xf] %vm1040, %v917
        %1047 = vst.msk [vmem:[%s145 + $0x18] sm:$0xf] %vm1040, %v918
        %1048 = vst.msk [vmem:[%s145 + $0x1c] sm:$0xf] %vm1040, %v919
        %1049 = vst.msk [vmem:[%s145 + $0x20] sm:$0xf] %vm1040, %v920
        %1050 = vst.msk [vmem:[%s145 + $0x24] sm:$0xf] %vm1040, %v921
        %1051 = vst.msk [vmem:[%s145 + $0x28] sm:$0xf] %vm1040, %v922
        %1052 = vst.msk [vmem:[%s145 + $0x2c] sm:$0xf] %vm1040, %v923
        %1053 = vst.msk [vmem:[%s145 + $0x30] sm:$0xf] %vm1040, %v924
        %1054 = vst.msk [vmem:[%s145 + $0x34] sm:$0xf] %vm1040, %v925
        %1055 = vst.msk [vmem:[%s145 + $0x38] sm:$0xf] %vm1040, %v926
        %1056 = vst.msk [vmem:[%s145 + $0x3c] sm:$0xf] %vm1040, %v927
        %1057 = vst.msk [vmem:[%s145 + $0x40] sm:$0xf] %vm1040, %v928
        %1058 = vst.msk [vmem:[%s145 + $0x44] sm:$0xf] %vm1040, %v929
        %1059 = vst.msk [vmem:[%s145 + $0x48] sm:$0xf] %vm1040, %v930
        %1060 = vst.msk [vmem:[%s145 + $0x4c] sm:$0xf] %vm1040, %v931
        %1061 = vst.msk [vmem:[%s145 + $0x50] sm:$0xf] %vm1040, %v932
        %1062 = vst.msk [vmem:[%s145 + $0x54] sm:$0xf] %vm1040, %v933
        %1063 = vst.msk [vmem:[%s145 + $0x58] sm:$0xf] %vm1040, %v934
        %1064 = vst.msk [vmem:[%s145 + $0x5c] sm:$0xf] %vm1040, %v935
        %1065 = vst.msk [vmem:[%s145 + $0x60] sm:$0xf] %vm1040, %v936
        %1066 = vst.msk [vmem:[%s145 + $0x64] sm:$0xf] %vm1040, %v937
        %1067 = vst.msk [vmem:[%s145 + $0x68] sm:$0xf] %vm1040, %v938
        %1068 = vst.msk [vmem:[%s145 + $0x6c] sm:$0xf] %vm1040, %v939
        %1069 = vst.msk [vmem:[%s145 + $0x70] sm:$0xf] %vm1040, %v940
        %1070 = vst.msk [vmem:[%s145 + $0x74] sm:$0xf] %vm1040, %v941
        %1071 = vst.msk [vmem:[%s145 + $0x78] sm:$0xf] %vm1040, %v942
        %1072 = vst.msk [vmem:[%s145 + $0x7c] sm:$0xf] %vm1040, %v943
        %1073 = vst.msk [vmem:[%s145 + $0x80] sm:$0xf] %vm1040, %v944
        %1074 = vst.msk [vmem:[%s145 + $0x84] sm:$0xf] %vm1040, %v945
        %1075 = vst.msk [vmem:[%s145 + $0x88] sm:$0xf] %vm1040, %v946
        %1076 = vst.msk [vmem:[%s145 + $0x8c] sm:$0xf] %vm1040, %v947
        %1077 = vst.msk [vmem:[%s145 + $0x90] sm:$0xf] %vm1040, %v948
        %1078 = vst.msk [vmem:[%s145 + $0x94] sm:$0xf] %vm1040, %v949
        %1079 = vst.msk [vmem:[%s145 + $0x98] sm:$0xf] %vm1040, %v950
        %1080 = vst.msk [vmem:[%s145 + $0x9c] sm:$0xf] %vm1040, %v951
        %1081 = vst.msk [vmem:[%s145 + $0xa0] sm:$0xf] %vm1040, %v952
        %1082 = vst.msk [vmem:[%s145 + $0xa4] sm:$0xf] %vm1040, %v953
        %1083 = vst.msk [vmem:[%s145 + $0xa8] sm:$0xf] %vm1040, %v954
        %1084 = vst.msk [vmem:[%s145 + $0xac] sm:$0xf] %vm1040, %v955
        %1085 = vst.msk [vmem:[%s145 + $0xb0] sm:$0xf] %vm1040, %v956
        %1086 = vst.msk [vmem:[%s145 + $0xb4] sm:$0xf] %vm1040, %v957
        %1087 = vst.msk [vmem:[%s145 + $0xb8] sm:$0xf] %vm1040, %v958
        %1088 = vst.msk [vmem:[%s145 + $0xbc] sm:$0xf] %vm1040, %v959
        %1089 = vst.msk [vmem:[%s145 + $0xc0] sm:$0xf] %vm1040, %v960
        %1090 = vst.msk [vmem:[%s145 + $0xc4] sm:$0xf] %vm1040, %v961
        %1091 = vst.msk [vmem:[%s145 + $0xc8] sm:$0xf] %vm1040, %v962
        %1092 = vst.msk [vmem:[%s145 + $0xcc] sm:$0xf] %vm1040, %v963
        %1093 = vst.msk [vmem:[%s145 + $0xd0] sm:$0xf] %vm1040, %v964
        %1094 = vst.msk [vmem:[%s145 + $0xd4] sm:$0xf] %vm1040, %v965
        %1095 = vst.msk [vmem:[%s145 + $0xd8] sm:$0xf] %vm1040, %v966
        %1096 = vst.msk [vmem:[%s145 + $0xdc] sm:$0xf] %vm1040, %v967
        %1097 = vst.msk [vmem:[%s145 + $0xe0] sm:$0xf] %vm1040, %v968
        %1098 = vst.msk [vmem:[%s145 + $0xe4] sm:$0xf] %vm1040, %v969
        %1099 = vst.msk [vmem:[%s145 + $0xe8] sm:$0xf] %vm1040, %v970
        %1100 = vst.msk [vmem:[%s145 + $0xec] sm:$0xf] %vm1040, %v971
        %1101 = vst.msk [vmem:[%s145 + $0xf0] sm:$0xf] %vm1040, %v972
        %1102 = vst.msk [vmem:[%s145 + $0xf4] sm:$0xf] %vm1040, %v973
        %1103 = vst.msk [vmem:[%s145 + $0xf8] sm:$0xf] %vm1040, %v974
        %1104 = vst.msk [vmem:[%s145 + $0xfc] sm:$0xf] %vm1040, %v975
        %s1105 = sand.u32 %s68, 1
        %s1106 = sand.u32 %s68, 1
        %s1107 = smul.addr %s1106, 256
        %s1108 = scalar_lea.vmem [#allocation2], %s1107
        // Predicated region
        $region29: #{tpu_custom_call.1} parent=27 // pred_check
          %p1109 = pneg %p78
        $region30: #{tpu_custom_call.1} parent=27 // pred_check_branch
          %1111 = sbr.rel (%p1109) target = $region32
        $region31: #{tpu_custom_call.1} parent=27 // pred_region
          %s1112 = smul.u32 64, %s13
          %s1113 = ssub.s32 120, %s1112
          %p1114 = scmp.lt.s32.totalorder %s1113, 64
          %s1115 = scalar_select %p1114, %s1113, 64
          %s1116 = smul.u32 64, %s1115
          %p1117 = scmp.ne.s32.totalorder 0, %s1116
          %s1118 = smul.addr %s1112, 4
          %s1119 = scalar_lea.vmem %s2, %s1118
          // Predicated region
          $region33: #{tpu_custom_call.1} parent=31 // pred_check
            %p1120 = pneg %p1117
          $region34: #{tpu_custom_call.1} parent=31 // pred_check_branch
            %1122 = sbr.rel (%p1120) target = $region36
          $region35: #{tpu_custom_call.1} parent=31 // pred_region
            // Predicated region
            $region37: #{tpu_custom_call.1} parent=35 // pred_check
              _
            $region38: #{tpu_custom_call.1} parent=35 // pred_check_branch
              %1124 = sbr.rel target = $region40
            $region39: #{tpu_custom_call.1} parent=35 // pred_region
              // Predicated region
              $region59: #{tpu_custom_call.1} parent=39 // pred_check
                _
              $region60: #{tpu_custom_call.1} parent=39 // pred_check_branch
                %1300 = sbr.rel (0) target = $region62
              $region61: #{tpu_custom_call.1} parent=39 // pred_region
                %s1302 = ssub.s32 16, 1
                %s1303 = sshrl.u32 %s1115, 6
                // While loop
                $region63: #{tpu_custom_call.1} parent=61 // loop_pre_header
                  _
                $region64: #{tpu_custom_call.1} parent=61 // loop_header
                  %s1305 = sphi 0, %s1307
                  %p1306 = scmp.ge.s32.totalorder %s1305, %s1303
                  %s1310 = sphi 0, %s1443
                  %s1311 = sphi %s1108, %s1446
                  %s1312 = sphi %s1119, %s1447
                $region65: #{tpu_custom_call.1} parent=61 // loop_header_branch
                  %1309 = sbr.rel (%p1306) target = $region69
                $region66: #{tpu_custom_call.1} parent=61 // loop_body
                  %v1313 = vld [vmem:[%s1311] sm:%s1302]
                  %1314 = vst [vmem:[%s1312] sm:%s1302] %v1313
                  %v1315 = vld [vmem:[%s1311 + $0x4] sm:%s1302]
                  %1316 = vst [vmem:[%s1312 + $0x4] sm:%s1302] %v1315
                  %v1317 = vld [vmem:[%s1311 + $0x8] sm:%s1302]
                  %1318 = vst [vmem:[%s1312 + $0x8] sm:%s1302] %v1317
                  %v1319 = vld [vmem:[%s1311 + $0xc] sm:%s1302]
                  %1320 = vst [vmem:[%s1312 + $0xc] sm:%s1302] %v1319
                  %v1321 = vld [vmem:[%s1311 + $0x10] sm:%s1302]
                  %1322 = vst [vmem:[%s1312 + $0x10] sm:%s1302] %v1321
                  %v1323 = vld [vmem:[%s1311 + $0x14] sm:%s1302]
                  %1324 = vst [vmem:[%s1312 + $0x14] sm:%s1302] %v1323
                  %v1325 = vld [vmem:[%s1311 + $0x18] sm:%s1302]
                  %1326 = vst [vmem:[%s1312 + $0x18] sm:%s1302] %v1325
                  %v1327 = vld [vmem:[%s1311 + $0x1c] sm:%s1302]
                  %1328 = vst [vmem:[%s1312 + $0x1c] sm:%s1302] %v1327
                  %v1329 = vld [vmem:[%s1311 + $0x20] sm:%s1302]
                  %1330 = vst [vmem:[%s1312 + $0x20] sm:%s1302] %v1329
                  %v1331 = vld [vmem:[%s1311 + $0x24] sm:%s1302]
                  %1332 = vst [vmem:[%s1312 + $0x24] sm:%s1302] %v1331
                  %v1333 = vld [vmem:[%s1311 + $0x28] sm:%s1302]
                  %1334 = vst [vmem:[%s1312 + $0x28] sm:%s1302] %v1333
                  %v1335 = vld [vmem:[%s1311 + $0x2c] sm:%s1302]
                  %1336 = vst [vmem:[%s1312 + $0x2c] sm:%s1302] %v1335
                  %v1337 = vld [vmem:[%s1311 + $0x30] sm:%s1302]
                  %1338 = vst [vmem:[%s1312 + $0x30] sm:%s1302] %v1337
                  %v1339 = vld [vmem:[%s1311 + $0x34] sm:%s1302]
                  %1340 = vst [vmem:[%s1312 + $0x34] sm:%s1302] %v1339
                  %v1341 = vld [vmem:[%s1311 + $0x38] sm:%s1302]
                  %1342 = vst [vmem:[%s1312 + $0x38] sm:%s1302] %v1341
                  %v1343 = vld [vmem:[%s1311 + $0x3c] sm:%s1302]
                  %1344 = vst [vmem:[%s1312 + $0x3c] sm:%s1302] %v1343
                  %v1345 = vld [vmem:[%s1311 + $0x40] sm:%s1302]
                  %1346 = vst [vmem:[%s1312 + $0x40] sm:%s1302] %v1345
                  %v1347 = vld [vmem:[%s1311 + $0x44] sm:%s1302]
                  %1348 = vst [vmem:[%s1312 + $0x44] sm:%s1302] %v1347
                  %v1349 = vld [vmem:[%s1311 + $0x48] sm:%s1302]
                  %1350 = vst [vmem:[%s1312 + $0x48] sm:%s1302] %v1349
                  %v1351 = vld [vmem:[%s1311 + $0x4c] sm:%s1302]
                  %1352 = vst [vmem:[%s1312 + $0x4c] sm:%s1302] %v1351
                  %v1353 = vld [vmem:[%s1311 + $0x50] sm:%s1302]
                  %1354 = vst [vmem:[%s1312 + $0x50] sm:%s1302] %v1353
                  %v1355 = vld [vmem:[%s1311 + $0x54] sm:%s1302]
                  %1356 = vst [vmem:[%s1312 + $0x54] sm:%s1302] %v1355
                  %v1357 = vld [vmem:[%s1311 + $0x58] sm:%s1302]
                  %1358 = vst [vmem:[%s1312 + $0x58] sm:%s1302] %v1357
                  %v1359 = vld [vmem:[%s1311 + $0x5c] sm:%s1302]
                  %1360 = vst [vmem:[%s1312 + $0x5c] sm:%s1302] %v1359
                  %v1361 = vld [vmem:[%s1311 + $0x60] sm:%s1302]
                  %1362 = vst [vmem:[%s1312 + $0x60] sm:%s1302] %v1361
                  %v1363 = vld [vmem:[%s1311 + $0x64] sm:%s1302]
                  %1364 = vst [vmem:[%s1312 + $0x64] sm:%s1302] %v1363
                  %v1365 = vld [vmem:[%s1311 + $0x68] sm:%s1302]
                  %1366 = vst [vmem:[%s1312 + $0x68] sm:%s1302] %v1365
                  %v1367 = vld [vmem:[%s1311 + $0x6c] sm:%s1302]
                  %1368 = vst [vmem:[%s1312 + $0x6c] sm:%s1302] %v1367
                  %v1369 = vld [vmem:[%s1311 + $0x70] sm:%s1302]
                  %1370 = vst [vmem:[%s1312 + $0x70] sm:%s1302] %v1369
                  %v1371 = vld [vmem:[%s1311 + $0x74] sm:%s1302]
                  %1372 = vst [vmem:[%s1312 + $0x74] sm:%s1302] %v1371
                  %v1373 = vld [vmem:[%s1311 + $0x78] sm:%s1302]
                  %1374 = vst [vmem:[%s1312 + $0x78] sm:%s1302] %v1373
                  %v1375 = vld [vmem:[%s1311 + $0x7c] sm:%s1302]
                  %1376 = vst [vmem:[%s1312 + $0x7c] sm:%s1302] %v1375
                  %v1377 = vld [vmem:[%s1311 + $0x80] sm:%s1302]
                  %1378 = vst [vmem:[%s1312 + $0x80] sm:%s1302] %v1377
                  %v1379 = vld [vmem:[%s1311 + $0x84] sm:%s1302]
                  %1380 = vst [vmem:[%s1312 + $0x84] sm:%s1302] %v1379
                  %v1381 = vld [vmem:[%s1311 + $0x88] sm:%s1302]
                  %1382 = vst [vmem:[%s1312 + $0x88] sm:%s1302] %v1381
                  %v1383 = vld [vmem:[%s1311 + $0x8c] sm:%s1302]
                  %1384 = vst [vmem:[%s1312 + $0x8c] sm:%s1302] %v1383
                  %v1385 = vld [vmem:[%s1311 + $0x90] sm:%s1302]
                  %1386 = vst [vmem:[%s1312 + $0x90] sm:%s1302] %v1385
                  %v1387 = vld [vmem:[%s1311 + $0x94] sm:%s1302]
                  %1388 = vst [vmem:[%s1312 + $0x94] sm:%s1302] %v1387
                  %v1389 = vld [vmem:[%s1311 + $0x98] sm:%s1302]
                  %1390 = vst [vmem:[%s1312 + $0x98] sm:%s1302] %v1389
                  %v1391 = vld [vmem:[%s1311 + $0x9c] sm:%s1302]
                  %1392 = vst [vmem:[%s1312 + $0x9c] sm:%s1302] %v1391
                  %v1393 = vld [vmem:[%s1311 + $0xa0] sm:%s1302]
                  %1394 = vst [vmem:[%s1312 + $0xa0] sm:%s1302] %v1393
                  %v1395 = vld [vmem:[%s1311 + $0xa4] sm:%s1302]
                  %1396 = vst [vmem:[%s1312 + $0xa4] sm:%s1302] %v1395
                  %v1397 = vld [vmem:[%s1311 + $0xa8] sm:%s1302]
                  %1398 = vst [vmem:[%s1312 + $0xa8] sm:%s1302] %v1397
                  %v1399 = vld [vmem:[%s1311 + $0xac] sm:%s1302]
                  %1400 = vst [vmem:[%s1312 + $0xac] sm:%s1302] %v1399
                  %v1401 = vld [vmem:[%s1311 + $0xb0] sm:%s1302]
                  %1402 = vst [vmem:[%s1312 + $0xb0] sm:%s1302] %v1401
                  %v1403 = vld [vmem:[%s1311 + $0xb4] sm:%s1302]
                  %1404 = vst [vmem:[%s1312 + $0xb4] sm:%s1302] %v1403
                  %v1405 = vld [vmem:[%s1311 + $0xb8] sm:%s1302]
                  %1406 = vst [vmem:[%s1312 + $0xb8] sm:%s1302] %v1405
                  %v1407 = vld [vmem:[%s1311 + $0xbc] sm:%s1302]
                  %1408 = vst [vmem:[%s1312 + $0xbc] sm:%s1302] %v1407
                  %v1409 = vld [vmem:[%s1311 + $0xc0] sm:%s1302]
                  %1410 = vst [vmem:[%s1312 + $0xc0] sm:%s1302] %v1409
                  %v1411 = vld [vmem:[%s1311 + $0xc4] sm:%s1302]
                  %1412 = vst [vmem:[%s1312 + $0xc4] sm:%s1302] %v1411
                  %v1413 = vld [vmem:[%s1311 + $0xc8] sm:%s1302]
                  %1414 = vst [vmem:[%s1312 + $0xc8] sm:%s1302] %v1413
                  %v1415 = vld [vmem:[%s1311 + $0xcc] sm:%s1302]
                  %1416 = vst [vmem:[%s1312 + $0xcc] sm:%s1302] %v1415
                  %v1417 = vld [vmem:[%s1311 + $0xd0] sm:%s1302]
                  %1418 = vst [vmem:[%s1312 + $0xd0] sm:%s1302] %v1417
                  %v1419 = vld [vmem:[%s1311 + $0xd4] sm:%s1302]
                  %1420 = vst [vmem:[%s1312 + $0xd4] sm:%s1302] %v1419
                  %v1421 = vld [vmem:[%s1311 + $0xd8] sm:%s1302]
                  %1422 = vst [vmem:[%s1312 + $0xd8] sm:%s1302] %v1421
                  %v1423 = vld [vmem:[%s1311 + $0xdc] sm:%s1302]
                  %1424 = vst [vmem:[%s1312 + $0xdc] sm:%s1302] %v1423
                  %v1425 = vld [vmem:[%s1311 + $0xe0] sm:%s1302]
                  %1426 = vst [vmem:[%s1312 + $0xe0] sm:%s1302] %v1425
                  %v1427 = vld [vmem:[%s1311 + $0xe4] sm:%s1302]
                  %1428 = vst [vmem:[%s1312 + $0xe4] sm:%s1302] %v1427
                  %v1429 = vld [vmem:[%s1311 + $0xe8] sm:%s1302]
                  %1430 = vst [vmem:[%s1312 + $0xe8] sm:%s1302] %v1429
                  %v1431 = vld [vmem:[%s1311 + $0xec] sm:%s1302]
                  %1432 = vst [vmem:[%s1312 + $0xec] sm:%s1302] %v1431
                  %v1433 = vld [vmem:[%s1311 + $0xf0] sm:%s1302]
                  %1434 = vst [vmem:[%s1312 + $0xf0] sm:%s1302] %v1433
                  %v1435 = vld [vmem:[%s1311 + $0xf4] sm:%s1302]
                  %1436 = vst [vmem:[%s1312 + $0xf4] sm:%s1302] %v1435
                  %v1437 = vld [vmem:[%s1311 + $0xf8] sm:%s1302]
                  %1438 = vst [vmem:[%s1312 + $0xf8] sm:%s1302] %v1437
                  %v1439 = vld [vmem:[%s1311 + $0xfc] sm:%s1302]
                  %1440 = vst [vmem:[%s1312 + $0xfc] sm:%s1302] %v1439
                  %s1441 = sadd.s32 1, %s1310
                  %p1442 = scmp.ge.s32.totalorder %s1441, %s1303
                  %s1443 = scalar_select %p1442, 0, %s1441
                  %s1444 = smul.u32 %s1443, 256
                  %s1445 = smul.u32 %s1443, 256
                  %s1446 = scalar_lea.vmem %s1108, %s1444 [#allocation2]
                  %s1447 = scalar_lea.vmem %s1119, %s1445
                $region67: #{tpu_custom_call.1} parent=61 // loop_footer
                  %s1307 = sadd.s32 %s1305, 1
                $region68: #{tpu_custom_call.1} parent=61 // loop_footer_branch
                  %1304 = sbr.rel target = $region64
                $region69: #{tpu_custom_call.1} parent=61 // loop_exit
                  _
                %s1448 = sshrl.u32 %s1115, 6
                %s1449 = sand.u32 %s1115, 63
                %s1450 = smul.u32 %s1448, 64
                %s1451 = smul.u32 4, %s1450
                %s1452 = scalar_lea.vmem %s1108, %s1451 [#allocation2]
                %s1453 = smul.u32 4, %s1450
                %s1454 = scalar_lea.vmem %s1119, %s1453
                // While loop
                $region70: #{tpu_custom_call.1} parent=61 // loop_pre_header
                  _
                $region71: #{tpu_custom_call.1} parent=61 // loop_header
                  %s1456 = sphi 0, %s1458
                  %p1457 = scmp.ge.s32.totalorder %s1456, %s1449
                  %s1461 = sphi 0, %s1468
                  %s1462 = sphi %s1452, %s1471
                  %s1463 = sphi %s1454, %s1472
                $region72: #{tpu_custom_call.1} parent=61 // loop_header_branch
                  %1460 = sbr.rel (%p1457) target = $region76
                $region73: #{tpu_custom_call.1} parent=61 // loop_body
                  %v1464 = vld [vmem:[%s1462] sm:%s1302]
                  %1465 = vst [vmem:[%s1463] sm:%s1302] %v1464
                  %s1466 = sadd.s32 1, %s1461
                  %p1467 = scmp.ge.s32.totalorder %s1466, %s1449
                  %s1468 = scalar_select %p1467, 0, %s1466
                  %s1469 = smul.u32 %s1468, 4
                  %s1470 = smul.u32 %s1468, 4
                  %s1471 = scalar_lea.vmem %s1452, %s1469 [#allocation2]
                  %s1472 = scalar_lea.vmem %s1454, %s1470
                $region74: #{tpu_custom_call.1} parent=61 // loop_footer
                  %s1458 = sadd.s32 %s1456, 1
                $region75: #{tpu_custom_call.1} parent=61 // loop_footer_branch
                  %1455 = sbr.rel target = $region71
                $region76: #{tpu_custom_call.1} parent=61 // loop_exit
                  _
              $region62: #{tpu_custom_call.1} parent=39 // pred_fallthru
                _
            $region40: #{tpu_custom_call.1} parent=35 // pred_fallthru
              _
            // Predicated region
            $region41: #{tpu_custom_call.1} parent=35 // pred_check
              _
            $region42: #{tpu_custom_call.1} parent=35 // pred_check_branch
              %1126 = sbr.rel (0) target = $region44
            $region43: #{tpu_custom_call.1} parent=35 // pred_region
              %s1128 = ssub.s32 16, 1
              %s1129 = sshrl.u32 %s1115, 6
              // While loop
              $region45: #{tpu_custom_call.1} parent=43 // loop_pre_header
                _
              $region46: #{tpu_custom_call.1} parent=43 // loop_header
                %s1131 = sphi 0, %s1133
                %p1132 = scmp.ge.s32.totalorder %s1131, %s1129
                %s1136 = sphi 0, %s1269
                %s1137 = sphi %s1108, %s1272
                %s1138 = sphi %s1119, %s1273
              $region47: #{tpu_custom_call.1} parent=43 // loop_header_branch
                %1135 = sbr.rel (%p1132) target = $region51
              $region48: #{tpu_custom_call.1} parent=43 // loop_body
                %v1139 = vld [vmem:[%s1137] sm:%s1128]
                %1140 = vst [vmem:[%s1138] sm:%s1128] %v1139
                %v1141 = vld [vmem:[%s1137 + $0x4] sm:%s1128]
                %1142 = vst [vmem:[%s1138 + $0x4] sm:%s1128] %v1141
                %v1143 = vld [vmem:[%s1137 + $0x8] sm:%s1128]
                %1144 = vst [vmem:[%s1138 + $0x8] sm:%s1128] %v1143
                %v1145 = vld [vmem:[%s1137 + $0xc] sm:%s1128]
                %1146 = vst [vmem:[%s1138 + $0xc] sm:%s1128] %v1145
                %v1147 = vld [vmem:[%s1137 + $0x10] sm:%s1128]
                %1148 = vst [vmem:[%s1138 + $0x10] sm:%s1128] %v1147
                %v1149 = vld [vmem:[%s1137 + $0x14] sm:%s1128]
                %1150 = vst [vmem:[%s1138 + $0x14] sm:%s1128] %v1149
                %v1151 = vld [vmem:[%s1137 + $0x18] sm:%s1128]
                %1152 = vst [vmem:[%s1138 + $0x18] sm:%s1128] %v1151
                %v1153 = vld [vmem:[%s1137 + $0x1c] sm:%s1128]
                %1154 = vst [vmem:[%s1138 + $0x1c] sm:%s1128] %v1153
                %v1155 = vld [vmem:[%s1137 + $0x20] sm:%s1128]
                %1156 = vst [vmem:[%s1138 + $0x20] sm:%s1128] %v1155
                %v1157 = vld [vmem:[%s1137 + $0x24] sm:%s1128]
                %1158 = vst [vmem:[%s1138 + $0x24] sm:%s1128] %v1157
                %v1159 = vld [vmem:[%s1137 + $0x28] sm:%s1128]
                %1160 = vst [vmem:[%s1138 + $0x28] sm:%s1128] %v1159
                %v1161 = vld [vmem:[%s1137 + $0x2c] sm:%s1128]
                %1162 = vst [vmem:[%s1138 + $0x2c] sm:%s1128] %v1161
                %v1163 = vld [vmem:[%s1137 + $0x30] sm:%s1128]
                %1164 = vst [vmem:[%s1138 + $0x30] sm:%s1128] %v1163
                %v1165 = vld [vmem:[%s1137 + $0x34] sm:%s1128]
                %1166 = vst [vmem:[%s1138 + $0x34] sm:%s1128] %v1165
                %v1167 = vld [vmem:[%s1137 + $0x38] sm:%s1128]
                %1168 = vst [vmem:[%s1138 + $0x38] sm:%s1128] %v1167
                %v1169 = vld [vmem:[%s1137 + $0x3c] sm:%s1128]
                %1170 = vst [vmem:[%s1138 + $0x3c] sm:%s1128] %v1169
                %v1171 = vld [vmem:[%s1137 + $0x40] sm:%s1128]
                %1172 = vst [vmem:[%s1138 + $0x40] sm:%s1128] %v1171
                %v1173 = vld [vmem:[%s1137 + $0x44] sm:%s1128]
                %1174 = vst [vmem:[%s1138 + $0x44] sm:%s1128] %v1173
                %v1175 = vld [vmem:[%s1137 + $0x48] sm:%s1128]
                %1176 = vst [vmem:[%s1138 + $0x48] sm:%s1128] %v1175
                %v1177 = vld [vmem:[%s1137 + $0x4c] sm:%s1128]
                %1178 = vst [vmem:[%s1138 + $0x4c] sm:%s1128] %v1177
                %v1179 = vld [vmem:[%s1137 + $0x50] sm:%s1128]
                %1180 = vst [vmem:[%s1138 + $0x50] sm:%s1128] %v1179
                %v1181 = vld [vmem:[%s1137 + $0x54] sm:%s1128]
                %1182 = vst [vmem:[%s1138 + $0x54] sm:%s1128] %v1181
                %v1183 = vld [vmem:[%s1137 + $0x58] sm:%s1128]
                %1184 = vst [vmem:[%s1138 + $0x58] sm:%s1128] %v1183
                %v1185 = vld [vmem:[%s1137 + $0x5c] sm:%s1128]
                %1186 = vst [vmem:[%s1138 + $0x5c] sm:%s1128] %v1185
                %v1187 = vld [vmem:[%s1137 + $0x60] sm:%s1128]
                %1188 = vst [vmem:[%s1138 + $0x60] sm:%s1128] %v1187
                %v1189 = vld [vmem:[%s1137 + $0x64] sm:%s1128]
                %1190 = vst [vmem:[%s1138 + $0x64] sm:%s1128] %v1189
                %v1191 = vld [vmem:[%s1137 + $0x68] sm:%s1128]
                %1192 = vst [vmem:[%s1138 + $0x68] sm:%s1128] %v1191
                %v1193 = vld [vmem:[%s1137 + $0x6c] sm:%s1128]
                %1194 = vst [vmem:[%s1138 + $0x6c] sm:%s1128] %v1193
                %v1195 = vld [vmem:[%s1137 + $0x70] sm:%s1128]
                %1196 = vst [vmem:[%s1138 + $0x70] sm:%s1128] %v1195
                %v1197 = vld [vmem:[%s1137 + $0x74] sm:%s1128]
                %1198 = vst [vmem:[%s1138 + $0x74] sm:%s1128] %v1197
                %v1199 = vld [vmem:[%s1137 + $0x78] sm:%s1128]
                %1200 = vst [vmem:[%s1138 + $0x78] sm:%s1128] %v1199
                %v1201 = vld [vmem:[%s1137 + $0x7c] sm:%s1128]
                %1202 = vst [vmem:[%s1138 + $0x7c] sm:%s1128] %v1201
                %v1203 = vld [vmem:[%s1137 + $0x80] sm:%s1128]
                %1204 = vst [vmem:[%s1138 + $0x80] sm:%s1128] %v1203
                %v1205 = vld [vmem:[%s1137 + $0x84] sm:%s1128]
                %1206 = vst [vmem:[%s1138 + $0x84] sm:%s1128] %v1205
                %v1207 = vld [vmem:[%s1137 + $0x88] sm:%s1128]
                %1208 = vst [vmem:[%s1138 + $0x88] sm:%s1128] %v1207
                %v1209 = vld [vmem:[%s1137 + $0x8c] sm:%s1128]
                %1210 = vst [vmem:[%s1138 + $0x8c] sm:%s1128] %v1209
                %v1211 = vld [vmem:[%s1137 + $0x90] sm:%s1128]
                %1212 = vst [vmem:[%s1138 + $0x90] sm:%s1128] %v1211
                %v1213 = vld [vmem:[%s1137 + $0x94] sm:%s1128]
                %1214 = vst [vmem:[%s1138 + $0x94] sm:%s1128] %v1213
                %v1215 = vld [vmem:[%s1137 + $0x98] sm:%s1128]
                %1216 = vst [vmem:[%s1138 + $0x98] sm:%s1128] %v1215
                %v1217 = vld [vmem:[%s1137 + $0x9c] sm:%s1128]
                %1218 = vst [vmem:[%s1138 + $0x9c] sm:%s1128] %v1217
                %v1219 = vld [vmem:[%s1137 + $0xa0] sm:%s1128]
                %1220 = vst [vmem:[%s1138 + $0xa0] sm:%s1128] %v1219
                %v1221 = vld [vmem:[%s1137 + $0xa4] sm:%s1128]
                %1222 = vst [vmem:[%s1138 + $0xa4] sm:%s1128] %v1221
                %v1223 = vld [vmem:[%s1137 + $0xa8] sm:%s1128]
                %1224 = vst [vmem:[%s1138 + $0xa8] sm:%s1128] %v1223
                %v1225 = vld [vmem:[%s1137 + $0xac] sm:%s1128]
                %1226 = vst [vmem:[%s1138 + $0xac] sm:%s1128] %v1225
                %v1227 = vld [vmem:[%s1137 + $0xb0] sm:%s1128]
                %1228 = vst [vmem:[%s1138 + $0xb0] sm:%s1128] %v1227
                %v1229 = vld [vmem:[%s1137 + $0xb4] sm:%s1128]
                %1230 = vst [vmem:[%s1138 + $0xb4] sm:%s1128] %v1229
                %v1231 = vld [vmem:[%s1137 + $0xb8] sm:%s1128]
                %1232 = vst [vmem:[%s1138 + $0xb8] sm:%s1128] %v1231
                %v1233 = vld [vmem:[%s1137 + $0xbc] sm:%s1128]
                %1234 = vst [vmem:[%s1138 + $0xbc] sm:%s1128] %v1233
                %v1235 = vld [vmem:[%s1137 + $0xc0] sm:%s1128]
                %1236 = vst [vmem:[%s1138 + $0xc0] sm:%s1128] %v1235
                %v1237 = vld [vmem:[%s1137 + $0xc4] sm:%s1128]
                %1238 = vst [vmem:[%s1138 + $0xc4] sm:%s1128] %v1237
                %v1239 = vld [vmem:[%s1137 + $0xc8] sm:%s1128]
                %1240 = vst [vmem:[%s1138 + $0xc8] sm:%s1128] %v1239
                %v1241 = vld [vmem:[%s1137 + $0xcc] sm:%s1128]
                %1242 = vst [vmem:[%s1138 + $0xcc] sm:%s1128] %v1241
                %v1243 = vld [vmem:[%s1137 + $0xd0] sm:%s1128]
                %1244 = vst [vmem:[%s1138 + $0xd0] sm:%s1128] %v1243
                %v1245 = vld [vmem:[%s1137 + $0xd4] sm:%s1128]
                %1246 = vst [vmem:[%s1138 + $0xd4] sm:%s1128] %v1245
                %v1247 = vld [vmem:[%s1137 + $0xd8] sm:%s1128]
                %1248 = vst [vmem:[%s1138 + $0xd8] sm:%s1128] %v1247
                %v1249 = vld [vmem:[%s1137 + $0xdc] sm:%s1128]
                %1250 = vst [vmem:[%s1138 + $0xdc] sm:%s1128] %v1249
                %v1251 = vld [vmem:[%s1137 + $0xe0] sm:%s1128]
                %1252 = vst [vmem:[%s1138 + $0xe0] sm:%s1128] %v1251
                %v1253 = vld [vmem:[%s1137 + $0xe4] sm:%s1128]
                %1254 = vst [vmem:[%s1138 + $0xe4] sm:%s1128] %v1253
                %v1255 = vld [vmem:[%s1137 + $0xe8] sm:%s1128]
                %1256 = vst [vmem:[%s1138 + $0xe8] sm:%s1128] %v1255
                %v1257 = vld [vmem:[%s1137 + $0xec] sm:%s1128]
                %1258 = vst [vmem:[%s1138 + $0xec] sm:%s1128] %v1257
                %v1259 = vld [vmem:[%s1137 + $0xf0] sm:%s1128]
                %1260 = vst [vmem:[%s1138 + $0xf0] sm:%s1128] %v1259
                %v1261 = vld [vmem:[%s1137 + $0xf4] sm:%s1128]
                %1262 = vst [vmem:[%s1138 + $0xf4] sm:%s1128] %v1261
                %v1263 = vld [vmem:[%s1137 + $0xf8] sm:%s1128]
                %1264 = vst [vmem:[%s1138 + $0xf8] sm:%s1128] %v1263
                %v1265 = vld [vmem:[%s1137 + $0xfc] sm:%s1128]
                %1266 = vst [vmem:[%s1138 + $0xfc] sm:%s1128] %v1265
                %s1267 = sadd.s32 1, %s1136
                %p1268 = scmp.ge.s32.totalorder %s1267, %s1129
                %s1269 = scalar_select %p1268, 0, %s1267
                %s1270 = smul.u32 %s1269, 256
                %s1271 = smul.u32 %s1269, 256
                %s1272 = scalar_lea.vmem %s1108, %s1270 [#allocation2]
                %s1273 = scalar_lea.vmem %s1119, %s1271
              $region49: #{tpu_custom_call.1} parent=43 // loop_footer
                %s1133 = sadd.s32 %s1131, 1
              $region50: #{tpu_custom_call.1} parent=43 // loop_footer_branch
                %1130 = sbr.rel target = $region46
              $region51: #{tpu_custom_call.1} parent=43 // loop_exit
                _
              %s1274 = sshrl.u32 %s1115, 6
              %s1275 = sand.u32 %s1115, 63
              %s1276 = smul.u32 %s1274, 64
              %s1277 = smul.u32 4, %s1276
              %s1278 = scalar_lea.vmem %s1108, %s1277 [#allocation2]
              %s1279 = smul.u32 4, %s1276
              %s1280 = scalar_lea.vmem %s1119, %s1279
              // While loop
              $region52: #{tpu_custom_call.1} parent=43 // loop_pre_header
                _
              $region53: #{tpu_custom_call.1} parent=43 // loop_header
                %s1282 = sphi 0, %s1284
                %p1283 = scmp.ge.s32.totalorder %s1282, %s1275
                %s1287 = sphi 0, %s1294
                %s1288 = sphi %s1278, %s1297
                %s1289 = sphi %s1280, %s1298
              $region54: #{tpu_custom_call.1} parent=43 // loop_header_branch
                %1286 = sbr.rel (%p1283) target = $region58
              $region55: #{tpu_custom_call.1} parent=43 // loop_body
                %v1290 = vld [vmem:[%s1288] sm:%s1128]
                %1291 = vst [vmem:[%s1289] sm:%s1128] %v1290
                %s1292 = sadd.s32 1, %s1287
                %p1293 = scmp.ge.s32.totalorder %s1292, %s1275
                %s1294 = scalar_select %p1293, 0, %s1292
                %s1295 = smul.u32 %s1294, 4
                %s1296 = smul.u32 %s1294, 4
                %s1297 = scalar_lea.vmem %s1278, %s1295 [#allocation2]
                %s1298 = scalar_lea.vmem %s1280, %s1296
              $region56: #{tpu_custom_call.1} parent=43 // loop_footer
                %s1284 = sadd.s32 %s1282, 1
              $region57: #{tpu_custom_call.1} parent=43 // loop_footer_branch
                %1281 = sbr.rel target = $region53
              $region58: #{tpu_custom_call.1} parent=43 // loop_exit
                _
            $region44: #{tpu_custom_call.1} parent=35 // pred_fallthru
              _
          $region36: #{tpu_custom_call.1} parent=31 // pred_fallthru
            _
          %1473 = vnop
        $region32: #{tpu_custom_call.1} parent=27 // pred_fallthru
          _
      $region28: #{tpu_custom_call.1} parent=5 // pred_fallthru
        _
      %p1474 = scmp.le.s32.totalorder 2, %s8
      // Predicated region
      $region77: #{tpu_custom_call.1} parent=5 // pred_check
        %p1475 = pneg %p1474
      $region78: #{tpu_custom_call.1} parent=5 // pred_check_branch
        %1477 = sbr.rel (%p1475) target = $region80
      $region79: #{tpu_custom_call.1} parent=5 // pred_region
        %s1478 = ssub.s32 %s8, 2
        // Predicated region
        $region81: #{tpu_custom_call.1} parent=79 // pred_check
          %p1479 = pneg %p84
        $region82: #{tpu_custom_call.1} parent=79 // pred_check_branch
          %1481 = sbr.rel (%p1479) target = $region84
        $region83: #{tpu_custom_call.1} parent=79 // pred_region
          %s1482 = sand.u32 %s69, 1
          %s1483 = sand.u32 %s69, 1
          %s1484 = smul.addr %s1483, 256
          %s1485 = scalar_lea.vmem [#allocation2], %s1484
        $region84: #{tpu_custom_call.1} parent=79 // pred_fallthru
          _
      $region80: #{tpu_custom_call.1} parent=5 // pred_fallthru
        _
    $region6: #{tpu_custom_call.1} parent=1 // loop_footer
      %s12 = sadd.s32 1, %s8
    $region7: #{tpu_custom_call.1} parent=1 // loop_footer_branch
      %7 = sbr.rel target = $region3
    $region8: #{tpu_custom_call.1} parent=1 // loop_exit
      _

</llo_original>
